<compile_context>
chip_gen: v7x
topology: tpu7x:2x2x1
jax: 0.10.0
libtpu: 0.0.40
codegen_flags: <defaults>
</compile_context>

<pallas_src>
import jax
import jax.numpy as jnp
from jax import lax
from jax.experimental import pallas as pl
from jax.experimental.pallas import tpu as pltpu


_LANE = 128          # lane width (last-dim alignment)
_SUBLANE = 8         # f32 sublane alignment (second-last dim)
_LEAKY_SLOPE = 0.2   # matches nn.LeakyReLU(0.2) in the PyTorch module
_MAX_UNROLL_BLOCKS = 8
_WEIGHT_ORDER = ("w_in", "b_in", "w1", "b1", "w2", "b2", "w_out", "b_out")


def _round_up(n, m):
    return ((n + m - 1) // m) * m


def _leaky_relu(x):
    return jnp.where(x > 0, x, _LEAKY_SLOPE * x)


# --------------------------------------------------------------------------- #
# Kernel
# --------------------------------------------------------------------------- #
def _gen_mlp_skip_kernel(x_ref, w_in_ref, b_in_ref,
                         w1_ref, b1_ref, w2_ref, b2_ref,
                         w_out_ref, b_out_ref, o_ref):
    """One batch tile: input layer + tanh, residual blocks, output layer.

    Weights arrive in the MXU dtype (bf16 by default); activations are cast to
    that dtype only as matmul operands; accumulation and elementwise math stay
    f32 (v5e has no bf16 VPU/EUP path anyway).
    """
    wdt = w_in_ref.dtype

    # input layer + tanh
    h = jnp.tanh(
        jnp.dot(x_ref[...].astype(wdt), w_in_ref[...],
                preferred_element_type=jnp.float32)
        + b_in_ref[...])

    def residual_block(i, h):
        t = jnp.dot(h.astype(wdt), w1_ref[i],
                    preferred_element_type=jnp.float32) + b1_ref[i]
        t = _leaky_relu(t)
        t = jnp.dot(t.astype(wdt), w2_ref[i],
                    preferred_element_type=jnp.float32) + b2_ref[i]
        return _leaky_relu(t + h)          # residual add + activation (f32)

    nb = w1_ref.shape[0]
    if nb <= _MAX_UNROLL_BLOCKS:
        for i in range(nb):                # small/static: unroll
            h = residual_block(i, h)
    else:
        # Deep stacks: bound code size / vreg live ranges with fori_loop.
        h = lax.fori_loop(0, nb, residual_block, h, unroll=2)

    # output layer (no activation, matches PyTorch forward)
    out = jnp.dot(h.astype(wdt), w_out_ref[...],
                  preferred_element_type=jnp.float32) + b_out_ref[...]
    o_ref[...] = out.astype(o_ref.dtype)


# --------------------------------------------------------------------------- #
# Parameter preparation (run ONCE, not per forward call)
# --------------------------------------------------------------------------- #
def prepare_params(params, *, weight_dtype=jnp.bfloat16):
    """Pad feature dims to 128-lane multiples and cast weights to the MXU dtype."""
    in_size, hid = params["w_in"].shape
    out_size = params["w_out"].shape[1]
    nb = params["w1"].shape[0]
    in_p = _round_up(in_size, _LANE)
    hid_p = _round_up(hid, _LANE)
    out_p = _round_up(out_size, _LANE)

    def pad2(a, r, c):
        return jnp.pad(a, ((0, r - a.shape[0]), (0, c - a.shape[1])))

    def pad3(a, r, c):
        return jnp.pad(a, ((0, 0), (0, r - a.shape[1]), (0, c - a.shape[2])))

    prepared = dict(
        w_in=pad2(params["w_in"], in_p, hid_p).astype(weight_dtype),
        b_in=pad2(params["b_in"], 1, hid_p).astype(jnp.float32),
        w1=pad3(params["w1"], hid_p, hid_p).astype(weight_dtype),
        b1=pad3(params["b1"], 1, hid_p).astype(jnp.float32),
        w2=pad3(params["w2"], hid_p, hid_p).astype(weight_dtype),
        b2=pad3(params["b2"], 1, hid_p).astype(jnp.float32),
        w_out=pad2(params["w_out"], hid_p, out_p).astype(weight_dtype),
        b_out=pad2(params["b_out"], 1, out_p).astype(jnp.float32),
    )
    dims = dict(in_size=in_size, hid=hid, out_size=out_size, nb=nb,
                in_p=in_p, hid_p=hid_p, out_p=out_p)
    return prepared, dims


def _vmem_capacity_bytes():
    try:
        return int(pltpu.get_tpu_info().vmem_capacity_bytes)
    except Exception:
        return 64 << 20   # conservative fallback: v7x per-TensorCore VMEM


def _choose_batch_tile(B, dims, weight_bytes, *, max_batch_tile, vmem_budget):
    """Budget-derived batch tile, chosen to minimize batch padding."""
    in_p, hid_p, out_p = dims["in_p"], dims["hid_p"], dims["out_p"]
    # f32 bytes resident per batch row: double-buffered x / out tiles plus a
    # generous allowance for in-kernel hid_p-wide temporaries.
    per_row = 4 * (2 * (in_p + out_p) + 8 * hid_p)
    headroom = vmem_budget - weight_bytes - (4 << 20)
    if headroom > per_row * _SUBLANE:
        tb_budget = (headroom // per_row) // _SUBLANE * _SUBLANE
    else:
        # TODO(synk): K-tile / stream weights if they alone overflow VMEM.
        tb_budget = _SUBLANE
    tb_cap = max(_SUBLANE, min(max_batch_tile, tb_budget))

    # pick tb that minimizes padded rows for this cap
    n_tiles = pl.cdiv(B, tb_cap)
    tb = _round_up(pl.cdiv(B, n_tiles), _SUBLANE)
    # v7x megacore: make sure the "parallel" batch axis has >= 2 tiles when possible
    if pl.cdiv(B, tb) == 1 and B > _SUBLANE:
        tb = _round_up(pl.cdiv(B, 2), _SUBLANE)
    b_p = _round_up(B, tb)
    return tb, b_p, b_p // tb


# --------------------------------------------------------------------------- #
# pallas_call wrapper
# --------------------------------------------------------------------------- #
def _build_forward(dims, tb, b_p, n_tiles, weight_bytes, *,
                   single_buffer_weights, vmem_limit):
    in_p, hid_p, out_p, nb = dims["in_p"], dims["hid_p"], dims["out_p"], dims["nb"]
    in_size, out_size = dims["in_size"], dims["out_size"]

    def const(shape):
        # Constant index map: weights/biases stay VMEM-resident across grid
        # steps.  Buffered(1) keeps a single copy (no pipelining needed since
        # the block never changes).
        kwargs = {"pipeline_mode": pl.Buffered(1)} if single_buffer_weights else {}
        return pl.BlockSpec(shape, lambda i, _n=len(shape): (0,) * _n, **kwargs)

    cost = pl.CostEstimate(
        flops=2 * b_p * (in_p * hid_p + 2 * nb * hid_p * hid_p + hid_p * out_p),
        transcendentals=b_p * hid_p,
        bytes_accessed=int(weight_bytes + 4 * b_p * (in_p + out_p)),
    )

    call = pl.pallas_call(
        _gen_mlp_skip_kernel,
        out_shape=jax.ShapeDtypeStruct((b_p, out_p), jnp.float32),
        grid=(n_tiles,),
        in_specs=[
            pl.BlockSpec((tb, in_p), lambda i: (i, 0)),   # streamed activation tile
            const((in_p, hid_p)),
            const((1, hid_p)),
            const((nb, hid_p, hid_p)),
            const((nb, 1, hid_p)),
            const((nb, hid_p, hid_p)),
            const((nb, 1, hid_p)),
            const((hid_p, out_p)),
            const((1, out_p)),
        ],
        out_specs=pl.BlockSpec((tb, out_p), lambda i: (i, 0)),
        compiler_params=pltpu.CompilerParams(
            dimension_semantics=("parallel",),   # shard batch tiles across TCs (v7x)
            vmem_limit_bytes=int(vmem_limit),
        ),
        cost_estimate=cost,
    )

    def run(x, *weights):
        B = x.shape[0]
        x_p = jnp.pad(x.astype(jnp.float32),
                      ((0, b_p - B), (0, in_p - in_size)))
        out_padded = call(x_p, *weights)
        return out_padded[:B, :out_size]

    return jax.jit(run)


def make_generater_mlp_skip(params, *, weight_dtype=jnp.bfloat16,
                            max_batch_tile=512):
    """Prepare parameters once and return forward(x) for Generater_MLP_Skip."""
    prepared, dims = prepare_params(params, weight_dtype=weight_dtype)
    weights = tuple(prepared[k] for k in _WEIGHT_ORDER)
    weight_bytes = sum(int(a.size) * a.dtype.itemsize for a in weights)

    vmem_cap = _vmem_capacity_bytes()
    vmem_budget = int(vmem_cap * 0.85)           # headroom for compiler scratch

    cache = {}                                    # (B, single_buffer) -> jitted fn

    def forward(x):
        assert x.ndim == 2 and x.shape[1] == dims["in_size"]
        B = int(x.shape[0])
        tb, b_p, n_tiles = _choose_batch_tile(
            B, dims, weight_bytes,
            max_batch_tile=max_batch_tile, vmem_budget=vmem_budget)
        # Limit sized for the worst-case (double-buffered weights) fallback.
        need = (2 * weight_bytes
                + 4 * tb * (2 * (dims["in_p"] + dims["out_p"]) + 8 * dims["hid_p"])
                + (8 << 20))
        vmem_limit = min(int(vmem_cap * 0.9), max(need, 32 << 20))

        last_err = None
        # Prefer single-buffered resident weights; fall back to the default
        # double-buffered specs if this Pallas build rejects pipeline_mode.
        for single in (True, False):
            key = (B, single)
            try:
                fn = cache.get(key)
                if fn is None:
                    fn = _build_forward(dims, tb, b_p, n_tiles, weight_bytes,
                                        single_buffer_weights=single,
                                        vmem_limit=vmem_limit)
                out = fn(x, *weights)
                cache[key] = fn
                return out
            except Exception as e:                # lowering / compile failure
                last_err = e
        raise last_err

    return forward


# --------------------------------------------------------------------------- #
# Init + references
# --------------------------------------------------------------------------- #
def init_params(key, input_size, hidden_size, output_size, num_blocks, std=0.03):
    """Mirrors weights_init_normal: weights ~ N(0, 0.03), biases = 0."""
    ks = jax.random.split(key, 4)
    return {
        "w_in": std * jax.random.normal(ks[0], (input_size, hidden_size), jnp.float32),
        "b_in": jnp.zeros((1, hidden_size), jnp.float32),
        "w1": std * jax.random.normal(ks[1], (num_blocks, hidden_size, hidden_size), jnp.float32),
        "b1": jnp.zeros((num_blocks, 1, hidden_size), jnp.float32),
        "w2": std * jax.random.normal(ks[2], (num_blocks, hidden_size, hidden_size), jnp.float32),
        "b2": jnp.zeros((num_blocks, 1, hidden_size), jnp.float32),
        "w_out": std * jax.random.normal(ks[3], (hidden_size, output_size), jnp.float32),
        "b_out": jnp.zeros((1, output_size), jnp.float32),
    }


def reference_forward_f32(x, params):
    """Pure-JAX f32 reference matching the PyTorch module exactly."""
    h = jnp.tanh(x @ params["w_in"] + params["b_in"])
    for i in range(params["w1"].shape[0]):
        t = _leaky_relu(h @ params["w1"][i] + params["b1"][i])
        h = _leaky_relu(t @ params["w2"][i] + params["b2"][i] + h)
    return h @ params["w_out"] + params["b_out"]


def reference_forward_prepared(x, prepared, dims):
    """Pure-JAX reference with the SAME dtype policy as the kernel
    (bf16 matmul operands, f32 accumulation & elementwise) on padded params."""
    wdt = prepared["w_in"].dtype

    def dot(a, w):
        return jnp.dot(a.astype(wdt), w, preferred_element_type=jnp.float32)

    x_p = jnp.pad(x.astype(jnp.float32),
                  ((0, 0), (0, dims["in_p"] - dims["in_size"])))
    h = jnp.tanh(dot(x_p, prepared["w_in"]) + prepared["b_in"])
    for i in range(dims["nb"]):
        t = _leaky_relu(dot(h, prepared["w1"][i]) + prepared["b1"][i])
        h = _leaky_relu(dot(t, prepared["w2"][i]) + prepared["b2"][i] + h)
    out = dot(h, prepared["w_out"]) + prepared["b_out"]
    return out[:, :dims["out_size"]]


if __name__ == "__main__":
    key = jax.random.PRNGKey(0)
    k_x, k_p = jax.random.split(key)

    batch = 8
    input_size = 16
    hidden_size = 32
    output_size = 16
    num_residual_blocks = 2

    x = jax.random.normal(k_x, (batch, input_size), jnp.float32)
    params = init_params(k_p, input_size, hidden_size, output_size,
                         num_residual_blocks)

    forward = make_generater_mlp_skip(params)        # bf16 MXU operands, f32 acc
    out = jax.block_until_ready(forward(x))
    assert out.shape == (batch, output_size)

    # Tight check vs a pure-JAX reference using the identical dtype policy.
    prepared, dims = prepare_params(params)
    ref_matched = reference_forward_prepared(x, prepared, dims)
    assert jnp.allclose(out, ref_matched, atol=1e-3, rtol=1e-3), \
        "mismatch vs dtype-matched reference"

    # Loose semantic check vs the full-f32 (PyTorch-equivalent) reference
    # (slack covers bf16 weight/operand rounding only).
    ref_f32 = reference_forward_f32(x, params)
    assert jnp.allclose(out, ref_f32, atol=5e-2, rtol=5e-2), \
        "mismatch vs f32 reference"

    print("KERNEL_OK")
</pallas_src>

<mosaic_0001>
module attributes {stable_mosaic.version = 11 : i64} {
  func.func @_gen_mlp_skip_kernel(%arg0: i32, %arg1: memref<8x128xf32, #tpu.memory_space<vmem>>, %arg2: memref<128x128xbf16, #tpu.memory_space<vmem>>, %arg3: memref<1x128xf32, #tpu.memory_space<vmem>>, %arg4: memref<2x128x128xbf16, #tpu.memory_space<vmem>>, %arg5: memref<2x1x128xf32, #tpu.memory_space<vmem>>, %arg6: memref<2x128x128xbf16, #tpu.memory_space<vmem>>, %arg7: memref<2x1x128xf32, #tpu.memory_space<vmem>>, %arg8: memref<128x128xbf16, #tpu.memory_space<vmem>>, %arg9: memref<1x128xf32, #tpu.memory_space<vmem>>, %arg10: memref<8x128xf32, #tpu.memory_space<vmem>>) attributes {dimension_semantics = [#tpu.dimension_semantics<parallel>], iteration_bounds = array<i64: 1>, scalar_prefetch = 0 : i64, scratch_operands = 0 : i64, tpu.core_type = #tpu.core_type<tc>, window_params = [{transform_indices = @transform_0, window_bounds = array<i64: 8, 128>}, {pipeline_mode = #tpu.pipeline_mode<synchronous>, transform_indices = @transform_1, window_bounds = array<i64: 128, 128>}, {pipeline_mode = #tpu.pipeline_mode<synchronous>, transform_indices = @transform_2, window_bounds = array<i64: 1, 128>}, {pipeline_mode = #tpu.pipeline_mode<synchronous>, transform_indices = @transform_3, window_bounds = array<i64: 2, 128, 128>}, {pipeline_mode = #tpu.pipeline_mode<synchronous>, transform_indices = @transform_4, window_bounds = array<i64: 2, 1, 128>}, {pipeline_mode = #tpu.pipeline_mode<synchronous>, transform_indices = @transform_5, window_bounds = array<i64: 2, 128, 128>}, {pipeline_mode = #tpu.pipeline_mode<synchronous>, transform_indices = @transform_6, window_bounds = array<i64: 2, 1, 128>}, {pipeline_mode = #tpu.pipeline_mode<synchronous>, transform_indices = @transform_7, window_bounds = array<i64: 128, 128>}, {pipeline_mode = #tpu.pipeline_mode<synchronous>, transform_indices = @transform_8, window_bounds = array<i64: 1, 128>}, {transform_indices = @transform_9, window_bounds = array<i64: 8, 128>}]} {
    %c0 = arith.constant 0 : index
    %c0_0 = arith.constant 0 : index
    %0 = vector.load %arg1[%c0, %c0_0] : memref<8x128xf32, #tpu.memory_space<vmem>>, vector<8x128xf32>
    %1 = arith.truncf %0 : vector<8x128xf32> to vector<8x128xbf16>
    %c0_1 = arith.constant 0 : index
    %c0_2 = arith.constant 0 : index
    %2 = vector.load %arg2[%c0_1, %c0_2] : memref<128x128xbf16, #tpu.memory_space<vmem>>, vector<128x128xbf16>
    %cst = arith.constant dense<0.000000e+00> : vector<8x128xf32>
    %3 = tpu.matmul %1, %2, %cst {dimension_numbers = #tpu.dot_dimension_numbers<[1], [0], [0], [1], [0, 0, 1, 1], [], []>} : vector<8x128xbf16>, vector<128x128xbf16>, vector<8x128xf32> -> vector<8x128xf32>
    %c0_3 = arith.constant 0 : index
    %c0_4 = arith.constant 0 : index
    %4 = vector.load %arg3[%c0_3, %c0_4] : memref<1x128xf32, #tpu.memory_space<vmem>>, vector<1x128xf32>
    %5 = vector.broadcast %4 : vector<1x128xf32> to vector<8x128xf32>
    %6 = arith.addf %3, %5 : vector<8x128xf32>
    %7 = math.tanh %6 : vector<8x128xf32>
    %8 = arith.truncf %7 : vector<8x128xf32> to vector<8x128xbf16>
    %c0_5 = arith.constant 0 : index
    %c0_6 = arith.constant 0 : index
    %c0_7 = arith.constant 0 : index
    %9 = vector.load %arg4[%c0_5, %c0_6, %c0_7] : memref<2x128x128xbf16, #tpu.memory_space<vmem>>, vector<1x128x128xbf16>
    %10 = vector.shape_cast %9 : vector<1x128x128xbf16> to vector<128x128xbf16>
    %cst_8 = arith.constant dense<0.000000e+00> : vector<8x128xf32>
    %11 = tpu.matmul %8, %10, %cst_8 {dimension_numbers = #tpu.dot_dimension_numbers<[1], [0], [0], [1], [0, 0, 1, 1], [], []>} : vector<8x128xbf16>, vector<128x128xbf16>, vector<8x128xf32> -> vector<8x128xf32>
    %c0_9 = arith.constant 0 : index
    %c0_10 = arith.constant 0 : index
    %c0_11 = arith.constant 0 : index
    %12 = vector.load %arg5[%c0_9, %c0_10, %c0_11] : memref<2x1x128xf32, #tpu.memory_space<vmem>>, vector<1x1x128xf32>
    %13 = vector.shape_cast %12 : vector<1x1x128xf32> to vector<1x128xf32>
    %14 = vector.broadcast %13 : vector<1x128xf32> to vector<8x128xf32>
    %15 = arith.addf %11, %14 : vector<8x128xf32>
    %cst_12 = arith.constant 0.000000e+00 : f32
    %16 = vector.broadcast %cst_12 : f32 to vector<8x128xf32>
    %17 = arith.cmpf ogt, %15, %16 : vector<8x128xf32>
    %cst_13 = arith.constant 2.000000e-01 : f32
    %18 = vector.broadcast %cst_13 : f32 to vector<8x128xf32>
    %19 = arith.mulf %18, %15 : vector<8x128xf32>
    %20 = arith.select %17, %15, %19 : vector<8x128xi1>, vector<8x128xf32>
    %21 = arith.truncf %20 : vector<8x128xf32> to vector<8x128xbf16>
    %c0_14 = arith.constant 0 : index
    %c0_15 = arith.constant 0 : index
    %c0_16 = arith.constant 0 : index
    %22 = vector.load %arg6[%c0_14, %c0_15, %c0_16] : memref<2x128x128xbf16, #tpu.memory_space<vmem>>, vector<1x128x128xbf16>
    %23 = vector.shape_cast %22 : vector<1x128x128xbf16> to vector<128x128xbf16>
    %cst_17 = arith.constant dense<0.000000e+00> : vector<8x128xf32>
    %24 = tpu.matmul %21, %23, %cst_17 {dimension_numbers = #tpu.dot_dimension_numbers<[1], [0], [0], [1], [0, 0, 1, 1], [], []>} : vector<8x128xbf16>, vector<128x128xbf16>, vector<8x128xf32> -> vector<8x128xf32>
    %c0_18 = arith.constant 0 : index
    %c0_19 = arith.constant 0 : index
    %c0_20 = arith.constant 0 : index
    %25 = vector.load %arg7[%c0_18, %c0_19, %c0_20] : memref<2x1x128xf32, #tpu.memory_space<vmem>>, vector<1x1x128xf32>
    %26 = vector.shape_cast %25 : vector<1x1x128xf32> to vector<1x128xf32>
    %27 = vector.broadcast %26 : vector<1x128xf32> to vector<8x128xf32>
    %28 = arith.addf %24, %27 : vector<8x128xf32>
    %29 = arith.addf %28, %7 : vector<8x128xf32>
    %cst_21 = arith.constant 0.000000e+00 : f32
    %30 = vector.broadcast %cst_21 : f32 to vector<8x128xf32>
    %31 = arith.cmpf ogt, %29, %30 : vector<8x128xf32>
    %cst_22 = arith.constant 2.000000e-01 : f32
    %32 = vector.broadcast %cst_22 : f32 to vector<8x128xf32>
    %33 = arith.mulf %32, %29 : vector<8x128xf32>
    %34 = arith.select %31, %29, %33 : vector<8x128xi1>, vector<8x128xf32>
    %35 = arith.truncf %34 : vector<8x128xf32> to vector<8x128xbf16>
    %c1 = arith.constant 1 : index
    %c0_23 = arith.constant 0 : index
    %c0_24 = arith.constant 0 : index
    %36 = vector.load %arg4[%c1, %c0_23, %c0_24] : memref<2x128x128xbf16, #tpu.memory_space<vmem>>, vector<1x128x128xbf16>
    %37 = vector.shape_cast %36 : vector<1x128x128xbf16> to vector<128x128xbf16>
    %cst_25 = arith.constant dense<0.000000e+00> : vector<8x128xf32>
    %38 = tpu.matmul %35, %37, %cst_25 {dimension_numbers = #tpu.dot_dimension_numbers<[1], [0], [0], [1], [0, 0, 1, 1], [], []>} : vector<8x128xbf16>, vector<128x128xbf16>, vector<8x128xf32> -> vector<8x128xf32>
    %c1_26 = arith.constant 1 : index
    %c0_27 = arith.constant 0 : index
    %c0_28 = arith.constant 0 : index
    %39 = vector.load %arg5[%c1_26, %c0_27, %c0_28] : memref<2x1x128xf32, #tpu.memory_space<vmem>>, vector<1x1x128xf32>
    %40 = vector.shape_cast %39 : vector<1x1x128xf32> to vector<1x128xf32>
    %41 = vector.broadcast %40 : vector<1x128xf32> to vector<8x128xf32>
    %42 = arith.addf %38, %41 : vector<8x128xf32>
    %cst_29 = arith.constant 0.000000e+00 : f32
    %43 = vector.broadcast %cst_29 : f32 to vector<8x128xf32>
    %44 = arith.cmpf ogt, %42, %43 : vector<8x128xf32>
    %cst_30 = arith.constant 2.000000e-01 : f32
    %45 = vector.broadcast %cst_30 : f32 to vector<8x128xf32>
    %46 = arith.mulf %45, %42 : vector<8x128xf32>
    %47 = arith.select %44, %42, %46 : vector<8x128xi1>, vector<8x128xf32>
    %48 = arith.truncf %47 : vector<8x128xf32> to vector<8x128xbf16>
    %c1_31 = arith.constant 1 : index
    %c0_32 = arith.constant 0 : index
    %c0_33 = arith.constant 0 : index
    %49 = vector.load %arg6[%c1_31, %c0_32, %c0_33] : memref<2x128x128xbf16, #tpu.memory_space<vmem>>, vector<1x128x128xbf16>
    %50 = vector.shape_cast %49 : vector<1x128x128xbf16> to vector<128x128xbf16>
    %cst_34 = arith.constant dense<0.000000e+00> : vector<8x128xf32>
    %51 = tpu.matmul %48, %50, %cst_34 {dimension_numbers = #tpu.dot_dimension_numbers<[1], [0], [0], [1], [0, 0, 1, 1], [], []>} : vector<8x128xbf16>, vector<128x128xbf16>, vector<8x128xf32> -> vector<8x128xf32>
    %c1_35 = arith.constant 1 : index
    %c0_36 = arith.constant 0 : index
    %c0_37 = arith.constant 0 : index
    %52 = vector.load %arg7[%c1_35, %c0_36, %c0_37] : memref<2x1x128xf32, #tpu.memory_space<vmem>>, vector<1x1x128xf32>
    %53 = vector.shape_cast %52 : vector<1x1x128xf32> to vector<1x128xf32>
    %54 = vector.broadcast %53 : vector<1x128xf32> to vector<8x128xf32>
    %55 = arith.addf %51, %54 : vector<8x128xf32>
    %56 = arith.addf %55, %34 : vector<8x128xf32>
    %cst_38 = arith.constant 0.000000e+00 : f32
    %57 = vector.broadcast %cst_38 : f32 to vector<8x128xf32>
    %58 = arith.cmpf ogt, %56, %57 : vector<8x128xf32>
    %cst_39 = arith.constant 2.000000e-01 : f32
    %59 = vector.broadcast %cst_39 : f32 to vector<8x128xf32>
    %60 = arith.mulf %59, %56 : vector<8x128xf32>
    %61 = arith.select %58, %56, %60 : vector<8x128xi1>, vector<8x128xf32>
    %62 = arith.truncf %61 : vector<8x128xf32> to vector<8x128xbf16>
    %c0_40 = arith.constant 0 : index
    %c0_41 = arith.constant 0 : index
    %63 = vector.load %arg8[%c0_40, %c0_41] : memref<128x128xbf16, #tpu.memory_space<vmem>>, vector<128x128xbf16>
    %cst_42 = arith.constant dense<0.000000e+00> : vector<8x128xf32>
    %64 = tpu.matmul %62, %63, %cst_42 {dimension_numbers = #tpu.dot_dimension_numbers<[1], [0], [0], [1], [0, 0, 1, 1], [], []>} : vector<8x128xbf16>, vector<128x128xbf16>, vector<8x128xf32> -> vector<8x128xf32>
    %c0_43 = arith.constant 0 : index
    %c0_44 = arith.constant 0 : index
    %65 = vector.load %arg9[%c0_43, %c0_44] : memref<1x128xf32, #tpu.memory_space<vmem>>, vector<1x128xf32>
    %66 = vector.broadcast %65 : vector<1x128xf32> to vector<8x128xf32>
    %67 = arith.addf %64, %66 : vector<8x128xf32>
    %c0_45 = arith.constant 0 : index
    %c0_46 = arith.constant 0 : index
    %68 = vector.load %arg10[%c0_45, %c0_46] : memref<8x128xf32, #tpu.memory_space<vmem>>, vector<8x128xf32>
    tpu.vector_store %arg10[%c0_45, %c0_46], %67 {strides = array<i32>} : memref<8x128xf32, #tpu.memory_space<vmem>>, vector<8x128xf32>,
    return
  }
  func.func @transform_0(%arg0: i32) -> (i32, i32) {
    %c0_i32 = arith.constant 0 : i32
    %c0_i32_0 = arith.constant 0 : i32
    return %arg0, %c0_i32 : i32, i32
  }
  func.func @transform_1(%arg0: i32) -> (i32, i32) {
    %c0_i32 = arith.constant 0 : i32
    %c0_i32_0 = arith.constant 0 : i32
    %c0_i32_1 = arith.constant 0 : i32
    return %c0_i32, %c0_i32_0 : i32, i32
  }
  func.func @transform_2(%arg0: i32) -> (i32, i32) {
    %c0_i32 = arith.constant 0 : i32
    %c0_i32_0 = arith.constant 0 : i32
    %c0_i32_1 = arith.constant 0 : i32
    return %c0_i32, %c0_i32_0 : i32, i32
  }
  func.func @transform_3(%arg0: i32) -> (i32, i32, i32) {
    %c0_i32 = arith.constant 0 : i32
    %c0_i32_0 = arith.constant 0 : i32
    %c0_i32_1 = arith.constant 0 : i32
    %c0_i32_2 = arith.constant 0 : i32
    return %c0_i32, %c0_i32_0, %c0_i32_1 : i32, i32, i32
  }
  func.func @transform_4(%arg0: i32) -> (i32, i32, i32) {
    %c0_i32 = arith.constant 0 : i32
    %c0_i32_0 = arith.constant 0 : i32
    %c0_i32_1 = arith.constant 0 : i32
    %c0_i32_2 = arith.constant 0 : i32
    return %c0_i32, %c0_i32_0, %c0_i32_1 : i32, i32, i32
  }
  func.func @transform_5(%arg0: i32) -> (i32, i32, i32) {
    %c0_i32 = arith.constant 0 : i32
    %c0_i32_0 = arith.constant 0 : i32
    %c0_i32_1 = arith.constant 0 : i32
    %c0_i32_2 = arith.constant 0 : i32
    return %c0_i32, %c0_i32_0, %c0_i32_1 : i32, i32, i32
  }
  func.func @transform_6(%arg0: i32) -> (i32, i32, i32) {
    %c0_i32 = arith.constant 0 : i32
    %c0_i32_0 = arith.constant 0 : i32
    %c0_i32_1 = arith.constant 0 : i32
    %c0_i32_2 = arith.constant 0 : i32
    return %c0_i32, %c0_i32_0, %c0_i32_1 : i32, i32, i32
  }
  func.func @transform_7(%arg0: i32) -> (i32, i32) {
    %c0_i32 = arith.constant 0 : i32
    %c0_i32_0 = arith.constant 0 : i32
    %c0_i32_1 = arith.constant 0 : i32
    return %c0_i32, %c0_i32_0 : i32, i32
  }
  func.func @transform_8(%arg0: i32) -> (i32, i32) {
    %c0_i32 = arith.constant 0 : i32
    %c0_i32_0 = arith.constant 0 : i32
    %c0_i32_1 = arith.constant 0 : i32
    return %c0_i32, %c0_i32_0 : i32, i32
  }
  func.func @transform_9(%arg0: i32) -> (i32, i32) {
    %c0_i32 = arith.constant 0 : i32
    %c0_i32_0 = arith.constant 0 : i32
    return %arg0, %c0_i32 : i32, i32
  }
}

module attributes {stable_mosaic.version = 11 : i64} {
  func.func @_gen_mlp_skip_kernel(%arg0: i32, %arg1: memref<8x128xf32, #tpu.memory_space<vmem>>, %arg2: memref<128x128xbf16, #tpu.memory_space<vmem>>, %arg3: memref<1x128xf32, #tpu.memory_space<vmem>>, %arg4: memref<2x128x128xbf16, #tpu.memory_space<vmem>>, %arg5: memref<2x1x128xf32, #tpu.memory_space<vmem>>, %arg6: memref<2x128x128xbf16, #tpu.memory_space<vmem>>, %arg7: memref<2x1x128xf32, #tpu.memory_space<vmem>>, %arg8: memref<128x128xbf16, #tpu.memory_space<vmem>>, %arg9: memref<1x128xf32, #tpu.memory_space<vmem>>, %arg10: memref<8x128xf32, #tpu.memory_space<vmem>>) attributes {dimension_semantics = [#tpu.dimension_semantics<parallel>], iteration_bounds = array<i64: 1>, scalar_prefetch = 0 : i64, scratch_operands = 0 : i64, tpu.core_type = #tpu.core_type<tc>, window_params = [{transform_indices = @transform_0, window_bounds = array<i64: 8, 128>}, {pipeline_mode = #tpu.pipeline_mode<synchronous>, transform_indices = @transform_1, window_bounds = array<i64: 128, 128>}, {pipeline_mode = #tpu.pipeline_mode<synchronous>, transform_indices = @transform_2, window_bounds = array<i64: 1, 128>}, {pipeline_mode = #tpu.pipeline_mode<synchronous>, transform_indices = @transform_3, window_bounds = array<i64: 2, 128, 128>}, {pipeline_mode = #tpu.pipeline_mode<synchronous>, transform_indices = @transform_4, window_bounds = array<i64: 2, 1, 128>}, {pipeline_mode = #tpu.pipeline_mode<synchronous>, transform_indices = @transform_5, window_bounds = array<i64: 2, 128, 128>}, {pipeline_mode = #tpu.pipeline_mode<synchronous>, transform_indices = @transform_6, window_bounds = array<i64: 2, 1, 128>}, {pipeline_mode = #tpu.pipeline_mode<synchronous>, transform_indices = @transform_7, window_bounds = array<i64: 128, 128>}, {pipeline_mode = #tpu.pipeline_mode<synchronous>, transform_indices = @transform_8, window_bounds = array<i64: 1, 128>}, {transform_indices = @transform_9, window_bounds = array<i64: 8, 128>}]} {
    %c0 = arith.constant 0 : index
    %c0_0 = arith.constant 0 : index
    %0 = vector.load %arg1[%c0, %c0_0] : memref<8x128xf32, #tpu.memory_space<vmem>>, vector<8x128xf32>
    %1 = arith.truncf %0 : vector<8x128xf32> to vector<8x128xbf16>
    %c0_1 = arith.constant 0 : index
    %c0_2 = arith.constant 0 : index
    %2 = vector.load %arg2[%c0_1, %c0_2] : memref<128x128xbf16, #tpu.memory_space<vmem>>, vector<128x128xbf16>
    %cst = arith.constant dense<0.000000e+00> : vector<8x128xf32>
    %3 = tpu.matmul %1, %2, %cst {dimension_numbers = #tpu.dot_dimension_numbers<[1], [0], [0], [1], [0, 0, 1, 1], [], []>} : vector<8x128xbf16>, vector<128x128xbf16>, vector<8x128xf32> -> vector<8x128xf32>
    %c0_3 = arith.constant 0 : index
    %c0_4 = arith.constant 0 : index
    %4 = vector.load %arg3[%c0_3, %c0_4] : memref<1x128xf32, #tpu.memory_space<vmem>>, vector<1x128xf32>
    %5 = vector.broadcast %4 : vector<1x128xf32> to vector<8x128xf32>
    %6 = arith.addf %3, %5 : vector<8x128xf32>
    %7 = math.tanh %6 : vector<8x128xf32>
    %8 = arith.truncf %7 : vector<8x128xf32> to vector<8x128xbf16>
    %c0_5 = arith.constant 0 : index
    %c0_6 = arith.constant 0 : index
    %c0_7 = arith.constant 0 : index
    %9 = vector.load %arg4[%c0_5, %c0_6, %c0_7] : memref<2x128x128xbf16, #tpu.memory_space<vmem>>, vector<1x128x128xbf16>
    %10 = vector.shape_cast %9 : vector<1x128x128xbf16> to vector<128x128xbf16>
    %cst_8 = arith.constant dense<0.000000e+00> : vector<8x128xf32>
    %11 = tpu.matmul %8, %10, %cst_8 {dimension_numbers = #tpu.dot_dimension_numbers<[1], [0], [0], [1], [0, 0, 1, 1], [], []>} : vector<8x128xbf16>, vector<128x128xbf16>, vector<8x128xf32> -> vector<8x128xf32>
    %c0_9 = arith.constant 0 : index
    %c0_10 = arith.constant 0 : index
    %c0_11 = arith.constant 0 : index
    %12 = vector.load %arg5[%c0_9, %c0_10, %c0_11] : memref<2x1x128xf32, #tpu.memory_space<vmem>>, vector<1x1x128xf32>
    %13 = vector.shape_cast %12 : vector<1x1x128xf32> to vector<1x128xf32>
    %14 = vector.broadcast %13 : vector<1x128xf32> to vector<8x128xf32>
    %15 = arith.addf %11, %14 : vector<8x128xf32>
    %cst_12 = arith.constant 0.000000e+00 : f32
    %16 = vector.broadcast %cst_12 : f32 to vector<8x128xf32>
    %17 = arith.cmpf ogt, %15, %16 : vector<8x128xf32>
    %cst_13 = arith.constant 2.000000e-01 : f32
    %18 = vector.broadcast %cst_13 : f32 to vector<8x128xf32>
    %19 = arith.mulf %18, %15 : vector<8x128xf32>
    %20 = arith.select %17, %15, %19 : vector<8x128xi1>, vector<8x128xf32>
    %21 = arith.truncf %20 : vector<8x128xf32> to vector<8x128xbf16>
    %c0_14 = arith.constant 0 : index
    %c0_15 = arith.constant 0 : index
    %c0_16 = arith.constant 0 : index
    %22 = vector.load %arg6[%c0_14, %c0_15, %c0_16] : memref<2x128x128xbf16, #tpu.memory_space<vmem>>, vector<1x128x128xbf16>
    %23 = vector.shape_cast %22 : vector<1x128x128xbf16> to vector<128x128xbf16>
    %cst_17 = arith.constant dense<0.000000e+00> : vector<8x128xf32>
    %24 = tpu.matmul %21, %23, %cst_17 {dimension_numbers = #tpu.dot_dimension_numbers<[1], [0], [0], [1], [0, 0, 1, 1], [], []>} : vector<8x128xbf16>, vector<128x128xbf16>, vector<8x128xf32> -> vector<8x128xf32>
    %c0_18 = arith.constant 0 : index
    %c0_19 = arith.constant 0 : index
    %c0_20 = arith.constant 0 : index
    %25 = vector.load %arg7[%c0_18, %c0_19, %c0_20] : memref<2x1x128xf32, #tpu.memory_space<vmem>>, vector<1x1x128xf32>
    %26 = vector.shape_cast %25 : vector<1x1x128xf32> to vector<1x128xf32>
    %27 = vector.broadcast %26 : vector<1x128xf32> to vector<8x128xf32>
    %28 = arith.addf %24, %27 : vector<8x128xf32>
    %29 = arith.addf %28, %7 : vector<8x128xf32>
    %cst_21 = arith.constant 0.000000e+00 : f32
    %30 = vector.broadcast %cst_21 : f32 to vector<8x128xf32>
    %31 = arith.cmpf ogt, %29, %30 : vector<8x128xf32>
    %cst_22 = arith.constant 2.000000e-01 : f32
    %32 = vector.broadcast %cst_22 : f32 to vector<8x128xf32>
    %33 = arith.mulf %32, %29 : vector<8x128xf32>
    %34 = arith.select %31, %29, %33 : vector<8x128xi1>, vector<8x128xf32>
    %35 = arith.truncf %34 : vector<8x128xf32> to vector<8x128xbf16>
    %c1 = arith.constant 1 : index
    %c0_23 = arith.constant 0 : index
    %c0_24 = arith.constant 0 : index
    %36 = vector.load %arg4[%c1, %c0_23, %c0_24] : memref<2x128x128xbf16, #tpu.memory_space<vmem>>, vector<1x128x128xbf16>
    %37 = vector.shape_cast %36 : vector<1x128x128xbf16> to vector<128x128xbf16>
    %cst_25 = arith.constant dense<0.000000e+00> : vector<8x128xf32>
    %38 = tpu.matmul %35, %37, %cst_25 {dimension_numbers = #tpu.dot_dimension_numbers<[1], [0], [0], [1], [0, 0, 1, 1], [], []>} : vector<8x128xbf16>, vector<128x128xbf16>, vector<8x128xf32> -> vector<8x128xf32>
    %c1_26 = arith.constant 1 : index
    %c0_27 = arith.constant 0 : index
    %c0_28 = arith.constant 0 : index
    %39 = vector.load %arg5[%c1_26, %c0_27, %c0_28] : memref<2x1x128xf32, #tpu.memory_space<vmem>>, vector<1x1x128xf32>
    %40 = vector.shape_cast %39 : vector<1x1x128xf32> to vector<1x128xf32>
    %41 = vector.broadcast %40 : vector<1x128xf32> to vector<8x128xf32>
    %42 = arith.addf %38, %41 : vector<8x128xf32>
    %cst_29 = arith.constant 0.000000e+00 : f32
    %43 = vector.broadcast %cst_29 : f32 to vector<8x128xf32>
    %44 = arith.cmpf ogt, %42, %43 : vector<8x128xf32>
    %cst_30 = arith.constant 2.000000e-01 : f32
    %45 = vector.broadcast %cst_30 : f32 to vector<8x128xf32>
    %46 = arith.mulf %45, %42 : vector<8x128xf32>
    %47 = arith.select %44, %42, %46 : vector<8x128xi1>, vector<8x128xf32>
    %48 = arith.truncf %47 : vector<8x128xf32> to vector<8x128xbf16>
    %c1_31 = arith.constant 1 : index
    %c0_32 = arith.constant 0 : index
    %c0_33 = arith.constant 0 : index
    %49 = vector.load %arg6[%c1_31, %c0_32, %c0_33] : memref<2x128x128xbf16, #tpu.memory_space<vmem>>, vector<1x128x128xbf16>
    %50 = vector.shape_cast %49 : vector<1x128x128xbf16> to vector<128x128xbf16>
    %cst_34 = arith.constant dense<0.000000e+00> : vector<8x128xf32>
    %51 = tpu.matmul %48, %50, %cst_34 {dimension_numbers = #tpu.dot_dimension_numbers<[1], [0], [0], [1], [0, 0, 1, 1], [], []>} : vector<8x128xbf16>, vector<128x128xbf16>, vector<8x128xf32> -> vector<8x128xf32>
    %c1_35 = arith.constant 1 : index
    %c0_36 = arith.constant 0 : index
    %c0_37 = arith.constant 0 : index
    %52 = vector.load %arg7[%c1_35, %c0_36, %c0_37] : memref<2x1x128xf32, #tpu.memory_space<vmem>>, vector<1x1x128xf32>
    %53 = vector.shape_cast %52 : vector<1x1x128xf32> to vector<1x128xf32>
    %54 = vector.broadcast %53 : vector<1x128xf32> to vector<8x128xf32>
    %55 = arith.addf %51, %54 : vector<8x128xf32>
    %56 = arith.addf %55, %34 : vector<8x128xf32>
    %cst_38 = arith.constant 0.000000e+00 : f32
    %57 = vector.broadcast %cst_38 : f32 to vector<8x128xf32>
    %58 = arith.cmpf ogt, %56, %57 : vector<8x128xf32>
    %cst_39 = arith.constant 2.000000e-01 : f32
    %59 = vector.broadcast %cst_39 : f32 to vector<8x128xf32>
    %60 = arith.mulf %59, %56 : vector<8x128xf32>
    %61 = arith.select %58, %56, %60 : vector<8x128xi1>, vector<8x128xf32>
    %62 = arith.truncf %61 : vector<8x128xf32> to vector<8x128xbf16>
    %c0_40 = arith.constant 0 : index
    %c0_41 = arith.constant 0 : index
    %63 = vector.load %arg8[%c0_40, %c0_41] : memref<128x128xbf16, #tpu.memory_space<vmem>>, vector<128x128xbf16>
    %cst_42 = arith.constant dense<0.000000e+00> : vector<8x128xf32>
    %64 = tpu.matmul %62, %63, %cst_42 {dimension_numbers = #tpu.dot_dimension_numbers<[1], [0], [0], [1], [0, 0, 1, 1], [], []>} : vector<8x128xbf16>, vector<128x128xbf16>, vector<8x128xf32> -> vector<8x128xf32>
    %c0_43 = arith.constant 0 : index
    %c0_44 = arith.constant 0 : index
    %65 = vector.load %arg9[%c0_43, %c0_44] : memref<1x128xf32, #tpu.memory_space<vmem>>, vector<1x128xf32>
    %66 = vector.broadcast %65 : vector<1x128xf32> to vector<8x128xf32>
    %67 = arith.addf %64, %66 : vector<8x128xf32>
    %c0_45 = arith.constant 0 : index
    %c0_46 = arith.constant 0 : index
    %68 = vector.load %arg10[%c0_45, %c0_46] : memref<8x128xf32, #tpu.memory_space<vmem>>, vector<8x128xf32>
    tpu.vector_store %arg10[%c0_45, %c0_46], %67 {strides = array<i32>} : memref<8x128xf32, #tpu.memory_space<vmem>>, vector<8x128xf32>,
    return
  }
  func.func @transform_0(%arg0: i32) -> (i32, i32) {
    %c0_i32 = arith.constant 0 : i32
    %c0_i32_0 = arith.constant 0 : i32
    return %arg0, %c0_i32 : i32, i32
  }
  func.func @transform_1(%arg0: i32) -> (i32, i32) {
    %c0_i32 = arith.constant 0 : i32
    %c0_i32_0 = arith.constant 0 : i32
    %c0_i32_1 = arith.constant 0 : i32
    return %c0_i32, %c0_i32_0 : i32, i32
  }
  func.func @transform_2(%arg0: i32) -> (i32, i32) {
    %c0_i32 = arith.constant 0 : i32
    %c0_i32_0 = arith.constant 0 : i32
    %c0_i32_1 = arith.constant 0 : i32
    return %c0_i32, %c0_i32_0 : i32, i32
  }
  func.func @transform_3(%arg0: i32) -> (i32, i32, i32) {
    %c0_i32 = arith.constant 0 : i32
    %c0_i32_0 = arith.constant 0 : i32
    %c0_i32_1 = arith.constant 0 : i32
    %c0_i32_2 = arith.constant 0 : i32
    return %c0_i32, %c0_i32_0, %c0_i32_1 : i32, i32, i32
  }
  func.func @transform_4(%arg0: i32) -> (i32, i32, i32) {
    %c0_i32 = arith.constant 0 : i32
    %c0_i32_0 = arith.constant 0 : i32
    %c0_i32_1 = arith.constant 0 : i32
    %c0_i32_2 = arith.constant 0 : i32
    return %c0_i32, %c0_i32_0, %c0_i32_1 : i32, i32, i32
  }
  func.func @transform_5(%arg0: i32) -> (i32, i32, i32) {
    %c0_i32 = arith.constant 0 : i32
    %c0_i32_0 = arith.constant 0 : i32
    %c0_i32_1 = arith.constant 0 : i32
    %c0_i32_2 = arith.constant 0 : i32
    return %c0_i32, %c0_i32_0, %c0_i32_1 : i32, i32, i32
  }
  func.func @transform_6(%arg0: i32) -> (i32, i32, i32) {
    %c0_i32 = arith.constant 0 : i32
    %c0_i32_0 = arith.constant 0 : i32
    %c0_i32_1 = arith.constant 0 : i32
    %c0_i32_2 = arith.constant 0 : i32
    return %c0_i32, %c0_i32_0, %c0_i32_1 : i32, i32, i32
  }
  func.func @transform_7(%arg0: i32) -> (i32, i32) {
    %c0_i32 = arith.constant 0 : i32
    %c0_i32_0 = arith.constant 0 : i32
    %c0_i32_1 = arith.constant 0 : i32
    return %c0_i32, %c0_i32_0 : i32, i32
  }
  func.func @transform_8(%arg0: i32) -> (i32, i32) {
    %c0_i32 = arith.constant 0 : i32
    %c0_i32_0 = arith.constant 0 : i32
    %c0_i32_1 = arith.constant 0 : i32
    return %c0_i32, %c0_i32_0 : i32, i32
  }
  func.func @transform_9(%arg0: i32) -> (i32, i32) {
    %c0_i32 = arith.constant 0 : i32
    %c0_i32_0 = arith.constant 0 : i32
    return %arg0, %c0_i32 : i32, i32
  }
}

</mosaic_0001>

<llo_original>
// kernel: run.1
$region0: #{run.1}
  #allocation0 [shape = 'u32[]', space=smem, size = 0x4, offset = 0x4, fixed_abs, tag = 'smem constant byte address 0x4 - core index']
  #allocation1 [shape = 'u32[144,128]{1,0:T(1,128)}', space=vmem, size = 0x12000, scoped, tag = 'internal scratch']
  %s0 = inlined_call_operand.vmem [shape: f32[8,128], index: 0, kind: input, shape index: {}]
  %s1 = inlined_call_operand.hbm [shape: bf16[128,128], index: 1, kind: input, shape index: {}]
  %s2 = inlined_call_operand.vmem [shape: f32[1,128], index: 2, kind: input, shape index: {}]
  %s3 = inlined_call_operand.hbm [shape: bf16[2,128,128], index: 3, kind: input, shape index: {}]
  %s4 = inlined_call_operand.vmem [shape: f32[2,1,128], index: 4, kind: input, shape index: {}]
  %s5 = inlined_call_operand.hbm [shape: bf16[2,128,128], index: 5, kind: input, shape index: {}]
  %s6 = inlined_call_operand.vmem [shape: f32[2,1,128], index: 6, kind: input, shape index: {}]
  %s7 = inlined_call_operand.hbm [shape: bf16[128,128], index: 7, kind: input, shape index: {}]
  %s8 = inlined_call_operand.vmem [shape: f32[1,128], index: 8, kind: input, shape index: {}]
  %s9 = inlined_call_operand.hbm [shape: f32[8,128], index: 9, kind: output, shape index: {}]
  %s10 = sld [smem:[#allocation0]]
  $region62: #{run.1} parent=0
    _
  %s12 = ssub.s32 1, %s10
  %s13 = scalar_select 0, %s12, %s10
  $region1: #{run.1} parent=0
    #allocation2 [shape = 'u8[32768]{0}', space=vmem, size = 0x8000, scoped, tag = 'input window, operand 1, single buffered']
    #allocation3 [shape = 's32[1]{0}', space=sflag, size = 0x4, scoped, tag = 'scoped memory for run.1']
    #allocation4 [shape = 's32[1]{0}', space=sflag, size = 0x4, scoped, tag = 'scoped memory for run.1']
    #allocation5 [shape = 'u8[65536]{0}', space=vmem, size = 0x10000, scoped, tag = 'input window, operand 3, single buffered']
    #allocation6 [shape = 's32[1]{0}', space=sflag, size = 0x4, scoped, tag = 'scoped memory for run.1']
    #allocation7 [shape = 'u8[65536]{0}', space=vmem, size = 0x10000, scoped, tag = 'input window, operand 5, single buffered']
    #allocation8 [shape = 'u8[32768]{0}', space=vmem, size = 0x8000, scoped, tag = 'input window, operand 7, single buffered']
    #allocation9 [shape = 's32[1]{0}', space=sflag, size = 0x4, scoped, tag = 'scoped memory for run.1']
    #allocation10 [shape = 'u8[4096]{0}', space=vmem, size = 0x1000, scoped, tag = 'output window, operand 0, single buffered']
    %14 = vsyncpa [#allocation3], 0
    %15 = vsyncpa [#allocation6], 0
    %16 = vsyncpa [#allocation9], 0
    %17 = vsyncpa [#allocation4], 0
    // Predicated region
    $region2: #{run.1} parent=1 // pred_check
      _
    $region3: #{run.1} parent=1 // pred_check_branch
      %19 = sbr.rel (0) target = $region5
    $region4: #{run.1} parent=1 // pred_region
      _
    $region5: #{run.1} parent=1 // pred_fallthru
      _
    // Predicated region
    $region6: #{run.1} parent=1 // pred_check
      _
    $region7: #{run.1} parent=1 // pred_check_branch
      %21 = sbr.rel (0) target = $region9
    $region8: #{run.1} parent=1 // pred_region
      %s23 = ssub.s32 1024, 1024
      %24 = vsyncadd [#allocation3], %s23
      %s25 = sshll.u32 [#allocation2], 4
      %s26 = int_to_ptr.vmem [resolvable:$true] %s25
      %31 = dma.hbm_to_vmem [thread:$0]  %s1, 1024, %s26, [#allocation3], 64, 64, 4
    $region9: #{run.1} parent=1 // pred_fallthru
      _
    // Predicated region
    $region10: #{run.1} parent=1 // pred_check
      _
    $region11: #{run.1} parent=1 // pred_check_branch
      %33 = sbr.rel (0) target = $region13
    $region12: #{run.1} parent=1 // pred_region
      _
    $region13: #{run.1} parent=1 // pred_fallthru
      _
    // Predicated region
    $region14: #{run.1} parent=1 // pred_check
      _
    $region15: #{run.1} parent=1 // pred_check_branch
      %35 = sbr.rel (0) target = $region17
    $region16: #{run.1} parent=1 // pred_region
      %s37 = ssub.s32 2048, 2048
      %38 = vsyncadd [#allocation6], %s37
      %s39 = sshll.u32 [#allocation5], 4
      %s40 = int_to_ptr.vmem [resolvable:$true] %s39
      %45 = dma.hbm_to_vmem [thread:$0]  %s3, 2048, %s40, [#allocation6], 64, 64, 4
    $region17: #{run.1} parent=1 // pred_fallthru
      _
    // Predicated region
    $region18: #{run.1} parent=1 // pred_check
      _
    $region19: #{run.1} parent=1 // pred_check_branch
      %47 = sbr.rel (0) target = $region21
    $region20: #{run.1} parent=1 // pred_region
      _
    $region21: #{run.1} parent=1 // pred_fallthru
      _
    // Predicated region
    $region22: #{run.1} parent=1 // pred_check
      _
    $region23: #{run.1} parent=1 // pred_check_branch
      %49 = sbr.rel (0) target = $region25
    $region24: #{run.1} parent=1 // pred_region
      %s51 = ssub.s32 2048, 2048
      %52 = vsyncadd [#allocation6], %s51
      %s53 = sshll.u32 [#allocation7], 4
      %s54 = int_to_ptr.vmem [resolvable:$true] %s53
      %59 = dma.hbm_to_vmem [thread:$0]  %s5, 2048, %s54, [#allocation6], 64, 64, 4
    $region25: #{run.1} parent=1 // pred_fallthru
      _
    // Predicated region
    $region26: #{run.1} parent=1 // pred_check
      _
    $region27: #{run.1} parent=1 // pred_check_branch
      %61 = sbr.rel (0) target = $region29
    $region28: #{run.1} parent=1 // pred_region
      _
    $region29: #{run.1} parent=1 // pred_fallthru
      _
    // Predicated region
    $region30: #{run.1} parent=1 // pred_check
      _
    $region31: #{run.1} parent=1 // pred_check_branch
      %63 = sbr.rel (0) target = $region33
    $region32: #{run.1} parent=1 // pred_region
      %s65 = ssub.s32 1024, 1024
      %66 = vsyncadd [#allocation9], %s65
      %s67 = sshll.u32 [#allocation8], 4
      %s68 = int_to_ptr.vmem [resolvable:$true] %s67
      %73 = dma.hbm_to_vmem [thread:$0]  %s7, 1024, %s68, [#allocation9], 64, 64, 4
    $region33: #{run.1} parent=1 // pred_fallthru
      _
    // Predicated region
    $region34: #{run.1} parent=1 // pred_check
      _
    $region35: #{run.1} parent=1 // pred_check_branch
      %75 = sbr.rel (0) target = $region37
    $region36: #{run.1} parent=1 // pred_region
      _
    $region37: #{run.1} parent=1 // pred_fallthru
      _
    // Predicated region
    $region38: #{run.1} parent=1 // pred_check
      _
    $region39: #{run.1} parent=1 // pred_check_branch
      %77 = sbr.rel (0) target = $region41
    $region40: #{run.1} parent=1 // pred_region
      %78 = dma.done [#allocation3], 1024
    $region41: #{run.1} parent=1 // pred_fallthru
      _
    // Predicated region
    $region42: #{run.1} parent=1 // pred_check
      _
    $region43: #{run.1} parent=1 // pred_check_branch
      %80 = sbr.rel (0) target = $region45
    $region44: #{run.1} parent=1 // pred_region
      %81 = dma.done [#allocation6], 2048
    $region45: #{run.1} parent=1 // pred_fallthru
      _
    // Predicated region
    $region46: #{run.1} parent=1 // pred_check
      _
    $region47: #{run.1} parent=1 // pred_check_branch
      %83 = sbr.rel (0) target = $region49
    $region48: #{run.1} parent=1 // pred_region
      %84 = dma.done [#allocation6], 2048
    $region49: #{run.1} parent=1 // pred_fallthru
      _
    // Predicated region
    $region50: #{run.1} parent=1 // pred_check
      _
    $region51: #{run.1} parent=1 // pred_check_branch
      %86 = sbr.rel (0) target = $region53
    $region52: #{run.1} parent=1 // pred_region
      %87 = dma.done [#allocation9], 1024
    $region53: #{run.1} parent=1 // pred_fallthru
      _
    %v89 = vld [vmem:[%s0] sm:$0xff]
    %v90 = vpack.c.bf16 %v89, %v89
    %v91 = vld [vmem:[#allocation2] sm:$0xf]
    %v92 = vld [vmem:[#allocation2 + $0x4] sm:$0xf]
    %v93 = vld [vmem:[#allocation2 + $0x8] sm:$0xf]
    %v94 = vld [vmem:[#allocation2 + $0xc] sm:$0xf]
    %v95 = vld [vmem:[#allocation2 + $0x10] sm:$0xf]
    %v96 = vld [vmem:[#allocation2 + $0x14] sm:$0xf]
    %v97 = vld [vmem:[#allocation2 + $0x18] sm:$0xf]
    %v98 = vld [vmem:[#allocation2 + $0x1c] sm:$0xf]
    %v99 = vld [vmem:[#allocation2 + $0x20] sm:$0xf]
    %v100 = vld [vmem:[#allocation2 + $0x24] sm:$0xf]
    %v101 = vld [vmem:[#allocation2 + $0x28] sm:$0xf]
    %v102 = vld [vmem:[#allocation2 + $0x2c] sm:$0xf]
    %v103 = vld [vmem:[#allocation2 + $0x30] sm:$0xf]
    %v104 = vld [vmem:[#allocation2 + $0x34] sm:$0xf]
    %v105 = vld [vmem:[#allocation2 + $0x38] sm:$0xf]
    %v106 = vld [vmem:[#allocation2 + $0x3c] sm:$0xf]
    %v107 = vld [vmem:[%s2] sm:$0x1]
    %v109 = vlaneseq
    %v110 = vshrl.u32 %v109, 7
    %v111 = vsub.s32 0, %v110
    %v112 = vrot.slane %v107, %v111
    %v130 = vunpack.c.l.b16 %v91
    %v131 = vunpack.c.l.b16 %v92
    %v132 = vunpack.c.l.b16 %v93
    %v133 = vunpack.c.l.b16 %v94
    %v134 = vunpack.c.l.b16 %v95
    %v135 = vunpack.c.l.b16 %v96
    %v136 = vunpack.c.l.b16 %v97
    %v137 = vunpack.c.l.b16 %v98
    %v138 = vunpack.c.l.b16 %v99
    %v139 = vunpack.c.l.b16 %v100
    %v140 = vunpack.c.l.b16 %v101
    %v141 = vunpack.c.l.b16 %v102
    %v142 = vunpack.c.l.b16 %v103
    %v143 = vunpack.c.l.b16 %v104
    %v144 = vunpack.c.l.b16 %v105
    %v145 = vunpack.c.l.b16 %v106
    %v146 = vpack.c.b16 %v131, %v130
    %v147 = vpack.c.b16 %v133, %v132
    %v148 = vpack.c.b16 %v135, %v134
    %v149 = vpack.c.b16 %v137, %v136
    %v150 = vpack.c.b16 %v139, %v138
    %v151 = vpack.c.b16 %v141, %v140
    %v152 = vpack.c.b16 %v143, %v142
    %v153 = vpack.c.b16 %v145, %v144
    %162 = vmatprep.subr.bf16.mxu0 0
    %163 = vmatpush1.bf16.msra.mxu0 %v146
    %164 = vmatprep.subr.bf16.mxu0 0
    %165 = vmatpush1.bf16.msra.mxu0 %v147
    %166 = vmatprep.subr.bf16.mxu0 0
    %167 = vmatpush1.bf16.msra.mxu0 %v148
    %168 = vmatprep.subr.bf16.mxu0 0
    %169 = vmatpush1.bf16.msra.mxu0 %v149
    %170 = vmatprep.subr.bf16.mxu0 0
    %171 = vmatpush1.bf16.msra.mxu0 %v150
    %172 = vmatprep.subr.bf16.mxu0 0
    %173 = vmatpush1.bf16.msra.mxu0 %v151
    %174 = vmatprep.subr.bf16.mxu0 0
    %175 = vmatpush1.bf16.msra.mxu0 %v152
    %176 = vmatprep.subr.bf16.mxu0 0
    %177 = vmatpush1.bf16.msra.mxu0 %v153
    %178 = vmatprep.subr.bf16.mxu0 0
    %179 = vmatpush1.bf16.msra.mxu0 0
    %180 = vmatprep.subr.bf16.mxu0 0
    %181 = vmatpush1.bf16.msra.mxu0 0
    %182 = vmatprep.subr.bf16.mxu0 0
    %183 = vmatpush1.bf16.msra.mxu0 0
    %184 = vmatprep.subr.bf16.mxu0 0
    %185 = vmatpush1.bf16.msra.mxu0 0
    %186 = vmatprep.subr.bf16.mxu0 0
    %187 = vmatpush1.bf16.msra.mxu0 0
    %188 = vmatprep.subr.bf16.mxu0 0
    %189 = vmatpush1.bf16.msra.mxu0 0
    %190 = vmatprep.subr.bf16.mxu0 0
    %191 = vmatpush1.bf16.msra.mxu0 0
    %192 = vmatprep.subr.bf16.mxu0 0
    %193 = vmatpush1.bf16.msra.mxu0 0
    %194 = vmatprep.mubr.bf16.mxu0 0
    %195 = vmatmul.mubr.bf16.gmra.mrb[0].mxu0 %v90
    %v196 = vpop.f32.mrb[0].mxu0
    %v197 = vadd.f32 %v112, %v196
    %v198 = vpop.f32.mrb[0].mxu0
    %v199 = vpop.f32.mrb[0].mxu0
    %v200 = vpop.f32.mrb[0].mxu0
    %201 = vdwg.mxu0
    %v202 = vtanh.pop %v197
    %v203 = vpack.c.bf16 %v202, %v202
    %v204 = vld [vmem:[#allocation5] sm:$0xf]
    %v205 = vld [vmem:[#allocation5 + $0x4] sm:$0xf]
    %v206 = vld [vmem:[#allocation5 + $0x8] sm:$0xf]
    %v207 = vld [vmem:[#allocation5 + $0xc] sm:$0xf]
    %v208 = vld [vmem:[#allocation5 + $0x10] sm:$0xf]
    %v209 = vld [vmem:[#allocation5 + $0x14] sm:$0xf]
    %v210 = vld [vmem:[#allocation5 + $0x18] sm:$0xf]
    %v211 = vld [vmem:[#allocation5 + $0x1c] sm:$0xf]
    %v212 = vld [vmem:[#allocation5 + $0x20] sm:$0xf]
    %v213 = vld [vmem:[#allocation5 + $0x24] sm:$0xf]
    %v214 = vld [vmem:[#allocation5 + $0x28] sm:$0xf]
    %v215 = vld [vmem:[#allocation5 + $0x2c] sm:$0xf]
    %v216 = vld [vmem:[#allocation5 + $0x30] sm:$0xf]
    %v217 = vld [vmem:[#allocation5 + $0x34] sm:$0xf]
    %v218 = vld [vmem:[#allocation5 + $0x38] sm:$0xf]
    %v219 = vld [vmem:[#allocation5 + $0x3c] sm:$0xf]
    %v220 = vld [vmem:[%s4] sm:$0x1]
    %v222 = vlaneseq
    %v223 = vshrl.u32 %v222, 7
    %v224 = vsub.s32 0, %v223
    %v225 = vrot.slane %v220, %v224
    %v243 = vunpack.c.l.b16 %v204
    %v244 = vunpack.c.l.b16 %v205
    %v245 = vunpack.c.l.b16 %v206
    %v246 = vunpack.c.l.b16 %v207
    %v247 = vunpack.c.l.b16 %v208
    %v248 = vunpack.c.l.b16 %v209
    %v249 = vunpack.c.l.b16 %v210
    %v250 = vunpack.c.l.b16 %v211
    %v251 = vunpack.c.l.b16 %v212
    %v252 = vunpack.c.l.b16 %v213
    %v253 = vunpack.c.l.b16 %v214
    %v254 = vunpack.c.l.b16 %v215
    %v255 = vunpack.c.l.b16 %v216
    %v256 = vunpack.c.l.b16 %v217
    %v257 = vunpack.c.l.b16 %v218
    %v258 = vunpack.c.l.b16 %v219
    %v259 = vpack.c.b16 %v244, %v243
    %v260 = vpack.c.b16 %v246, %v245
    %v261 = vpack.c.b16 %v248, %v247
    %v262 = vpack.c.b16 %v250, %v249
    %v263 = vpack.c.b16 %v252, %v251
    %v264 = vpack.c.b16 %v254, %v253
    %v265 = vpack.c.b16 %v256, %v255
    %v266 = vpack.c.b16 %v258, %v257
    %275 = vmatprep.subr.bf16.mxu0 0
    %276 = vmatpush1.bf16.msra.mxu0 %v259
    %277 = vmatprep.subr.bf16.mxu0 0
    %278 = vmatpush1.bf16.msra.mxu0 %v260
    %279 = vmatprep.subr.bf16.mxu0 0
    %280 = vmatpush1.bf16.msra.mxu0 %v261
    %281 = vmatprep.subr.bf16.mxu0 0
    %282 = vmatpush1.bf16.msra.mxu0 %v262
    %283 = vmatprep.subr.bf16.mxu0 0
    %284 = vmatpush1.bf16.msra.mxu0 %v263
    %285 = vmatprep.subr.bf16.mxu0 0
    %286 = vmatpush1.bf16.msra.mxu0 %v264
    %287 = vmatprep.subr.bf16.mxu0 0
    %288 = vmatpush1.bf16.msra.mxu0 %v265
    %289 = vmatprep.subr.bf16.mxu0 0
    %290 = vmatpush1.bf16.msra.mxu0 %v266
    %291 = vmatprep.subr.bf16.mxu0 0
    %292 = vmatpush1.bf16.msra.mxu0 0
    %293 = vmatprep.subr.bf16.mxu0 0
    %294 = vmatpush1.bf16.msra.mxu0 0
    %295 = vmatprep.subr.bf16.mxu0 0
    %296 = vmatpush1.bf16.msra.mxu0 0
    %297 = vmatprep.subr.bf16.mxu0 0
    %298 = vmatpush1.bf16.msra.mxu0 0
    %299 = vmatprep.subr.bf16.mxu0 0
    %300 = vmatpush1.bf16.msra.mxu0 0
    %301 = vmatprep.subr.bf16.mxu0 0
    %302 = vmatpush1.bf16.msra.mxu0 0
    %303 = vmatprep.subr.bf16.mxu0 0
    %304 = vmatpush1.bf16.msra.mxu0 0
    %305 = vmatprep.subr.bf16.mxu0 0
    %306 = vmatpush1.bf16.msra.mxu0 0
    %307 = vmatprep.mubr.bf16.mxu0 0
    %308 = vmatmul.mubr.bf16.gmra.mrb[0].mxu0 %v203
    %v309 = vpop.f32.mrb[0].mxu0
    %v310 = vadd.f32 %v225, %v309
    %v311 = vpop.f32.mrb[0].mxu0
    %v312 = vpop.f32.mrb[0].mxu0
    %v313 = vpop.f32.mrb[0].mxu0
    %314 = vdwg.mxu0
    %vm315 = vcmp.gt.f32.partialorder %v310, 0.0
    %v316 = vmul.f32 %v310, 0.2
    %v317 = vsel %vm315, %v310, %v316
    %v318 = vpack.c.bf16 %v317, %v317
    %v319 = vld [vmem:[#allocation7] sm:$0xf]
    %v320 = vld [vmem:[#allocation7 + $0x4] sm:$0xf]
    %v321 = vld [vmem:[#allocation7 + $0x8] sm:$0xf]
    %v322 = vld [vmem:[#allocation7 + $0xc] sm:$0xf]
    %v323 = vld [vmem:[#allocation7 + $0x10] sm:$0xf]
    %v324 = vld [vmem:[#allocation7 + $0x14] sm:$0xf]
    %v325 = vld [vmem:[#allocation7 + $0x18] sm:$0xf]
    %v326 = vld [vmem:[#allocation7 + $0x1c] sm:$0xf]
    %v327 = vld [vmem:[#allocation7 + $0x20] sm:$0xf]
    %v328 = vld [vmem:[#allocation7 + $0x24] sm:$0xf]
    %v329 = vld [vmem:[#allocation7 + $0x28] sm:$0xf]
    %v330 = vld [vmem:[#allocation7 + $0x2c] sm:$0xf]
    %v331 = vld [vmem:[#allocation7 + $0x30] sm:$0xf]
    %v332 = vld [vmem:[#allocation7 + $0x34] sm:$0xf]
    %v333 = vld [vmem:[#allocation7 + $0x38] sm:$0xf]
    %v334 = vld [vmem:[#allocation7 + $0x3c] sm:$0xf]
    %v335 = vld [vmem:[%s6] sm:$0x1]
    %v337 = vlaneseq
    %v338 = vshrl.u32 %v337, 7
    %v339 = vsub.s32 0, %v338
    %v340 = vrot.slane %v335, %v339
    %v358 = vunpack.c.l.b16 %v319
    %v359 = vunpack.c.l.b16 %v320
    %v360 = vunpack.c.l.b16 %v321
    %v361 = vunpack.c.l.b16 %v322
    %v362 = vunpack.c.l.b16 %v323
    %v363 = vunpack.c.l.b16 %v324
    %v364 = vunpack.c.l.b16 %v325
    %v365 = vunpack.c.l.b16 %v326
    %v366 = vunpack.c.l.b16 %v327
    %v367 = vunpack.c.l.b16 %v328
    %v368 = vunpack.c.l.b16 %v329
    %v369 = vunpack.c.l.b16 %v330
    %v370 = vunpack.c.l.b16 %v331
    %v371 = vunpack.c.l.b16 %v332
    %v372 = vunpack.c.l.b16 %v333
    %v373 = vunpack.c.l.b16 %v334
    %v374 = vpack.c.b16 %v359, %v358
    %v375 = vpack.c.b16 %v361, %v360
    %v376 = vpack.c.b16 %v363, %v362
    %v377 = vpack.c.b16 %v365, %v364
    %v378 = vpack.c.b16 %v367, %v366
    %v379 = vpack.c.b16 %v369, %v368
    %v380 = vpack.c.b16 %v371, %v370
    %v381 = vpack.c.b16 %v373, %v372
    %390 = vmatprep.subr.bf16.mxu0 0
    %391 = vmatpush1.bf16.msra.mxu0 %v374
    %392 = vmatprep.subr.bf16.mxu0 0
    %393 = vmatpush1.bf16.msra.mxu0 %v375
    %394 = vmatprep.subr.bf16.mxu0 0
    %395 = vmatpush1.bf16.msra.mxu0 %v376
    %396 = vmatprep.subr.bf16.mxu0 0
    %397 = vmatpush1.bf16.msra.mxu0 %v377
    %398 = vmatprep.subr.bf16.mxu0 0
    %399 = vmatpush1.bf16.msra.mxu0 %v378
    %400 = vmatprep.subr.bf16.mxu0 0
    %401 = vmatpush1.bf16.msra.mxu0 %v379
    %402 = vmatprep.subr.bf16.mxu0 0
    %403 = vmatpush1.bf16.msra.mxu0 %v380
    %404 = vmatprep.subr.bf16.mxu0 0
    %405 = vmatpush1.bf16.msra.mxu0 %v381
    %406 = vmatprep.subr.bf16.mxu0 0
    %407 = vmatpush1.bf16.msra.mxu0 0
    %408 = vmatprep.subr.bf16.mxu0 0
    %409 = vmatpush1.bf16.msra.mxu0 0
    %410 = vmatprep.subr.bf16.mxu0 0
    %411 = vmatpush1.bf16.msra.mxu0 0
    %412 = vmatprep.subr.bf16.mxu0 0
    %413 = vmatpush1.bf16.msra.mxu0 0
    %414 = vmatprep.subr.bf16.mxu0 0
    %415 = vmatpush1.bf16.msra.mxu0 0
    %416 = vmatprep.subr.bf16.mxu0 0
    %417 = vmatpush1.bf16.msra.mxu0 0
    %418 = vmatprep.subr.bf16.mxu0 0
    %419 = vmatpush1.bf16.msra.mxu0 0
    %420 = vmatprep.subr.bf16.mxu0 0
    %421 = vmatpush1.bf16.msra.mxu0 0
    %422 = vmatprep.mubr.bf16.mxu0 0
    %423 = vmatmul.mubr.bf16.gmra.mrb[0].mxu0 %v318
    %v424 = vpop.f32.mrb[0].mxu0
    %v425 = vadd.f32 %v340, %v424
    %v426 = vpop.f32.mrb[0].mxu0
    %v427 = vpop.f32.mrb[0].mxu0
    %v428 = vpop.f32.mrb[0].mxu0
    %429 = vdwg.mxu0
    %v430 = vadd.f32 %v425, %v202
    %vm431 = vcmp.gt.f32.partialorder %v430, 0.0
    %v432 = vmul.f32 %v430, 0.2
    %v433 = vsel %vm431, %v430, %v432
    %v434 = vpack.c.bf16 %v433, %v433
    %s435 = scalar_lea.vmem [#allocation5], 64
    %v436 = vld [vmem:[%s435] sm:$0xf]
    %v437 = vld [vmem:[%s435 + $0x4] sm:$0xf]
    %v438 = vld [vmem:[%s435 + $0x8] sm:$0xf]
    %v439 = vld [vmem:[%s435 + $0xc] sm:$0xf]
    %v440 = vld [vmem:[%s435 + $0x10] sm:$0xf]
    %v441 = vld [vmem:[%s435 + $0x14] sm:$0xf]
    %v442 = vld [vmem:[%s435 + $0x18] sm:$0xf]
    %v443 = vld [vmem:[%s435 + $0x1c] sm:$0xf]
    %v444 = vld [vmem:[%s435 + $0x20] sm:$0xf]
    %v445 = vld [vmem:[%s435 + $0x24] sm:$0xf]
    %v446 = vld [vmem:[%s435 + $0x28] sm:$0xf]
    %v447 = vld [vmem:[%s435 + $0x2c] sm:$0xf]
    %v448 = vld [vmem:[%s435 + $0x30] sm:$0xf]
    %v449 = vld [vmem:[%s435 + $0x34] sm:$0xf]
    %v450 = vld [vmem:[%s435 + $0x38] sm:$0xf]
    %v451 = vld [vmem:[%s435 + $0x3c] sm:$0xf]
    %s452 = scalar_lea.vmem %s4, 1
    %v453 = vld [vmem:[%s452] sm:$0x1]
    %v455 = vlaneseq
    %v456 = vshrl.u32 %v455, 7
    %v457 = vsub.s32 0, %v456
    %v458 = vrot.slane %v453, %v457
    %v476 = vunpack.c.l.b16 %v436
    %v477 = vunpack.c.l.b16 %v437
    %v478 = vunpack.c.l.b16 %v438
    %v479 = vunpack.c.l.b16 %v439
    %v480 = vunpack.c.l.b16 %v440
    %v481 = vunpack.c.l.b16 %v441
    %v482 = vunpack.c.l.b16 %v442
    %v483 = vunpack.c.l.b16 %v443
    %v484 = vunpack.c.l.b16 %v444
    %v485 = vunpack.c.l.b16 %v445
    %v486 = vunpack.c.l.b16 %v446
    %v487 = vunpack.c.l.b16 %v447
    %v488 = vunpack.c.l.b16 %v448
    %v489 = vunpack.c.l.b16 %v449
    %v490 = vunpack.c.l.b16 %v450
    %v491 = vunpack.c.l.b16 %v451
    %v492 = vpack.c.b16 %v477, %v476
    %v493 = vpack.c.b16 %v479, %v478
    %v494 = vpack.c.b16 %v481, %v480
    %v495 = vpack.c.b16 %v483, %v482
    %v496 = vpack.c.b16 %v485, %v484
    %v497 = vpack.c.b16 %v487, %v486
    %v498 = vpack.c.b16 %v489, %v488
    %v499 = vpack.c.b16 %v491, %v490
    %508 = vmatprep.subr.bf16.mxu0 0
    %509 = vmatpush1.bf16.msra.mxu0 %v492
    %510 = vmatprep.subr.bf16.mxu0 0
    %511 = vmatpush1.bf16.msra.mxu0 %v493
    %512 = vmatprep.subr.bf16.mxu0 0
    %513 = vmatpush1.bf16.msra.mxu0 %v494
    %514 = vmatprep.subr.bf16.mxu0 0
    %515 = vmatpush1.bf16.msra.mxu0 %v495
    %516 = vmatprep.subr.bf16.mxu0 0
    %517 = vmatpush1.bf16.msra.mxu0 %v496
    %518 = vmatprep.subr.bf16.mxu0 0
    %519 = vmatpush1.bf16.msra.mxu0 %v497
    %520 = vmatprep.subr.bf16.mxu0 0
    %521 = vmatpush1.bf16.msra.mxu0 %v498
    %522 = vmatprep.subr.bf16.mxu0 0
    %523 = vmatpush1.bf16.msra.mxu0 %v499
    %524 = vmatprep.subr.bf16.mxu0 0
    %525 = vmatpush1.bf16.msra.mxu0 0
    %526 = vmatprep.subr.bf16.mxu0 0
    %527 = vmatpush1.bf16.msra.mxu0 0
    %528 = vmatprep.subr.bf16.mxu0 0
    %529 = vmatpush1.bf16.msra.mxu0 0
    %530 = vmatprep.subr.bf16.mxu0 0
    %531 = vmatpush1.bf16.msra.mxu0 0
    %532 = vmatprep.subr.bf16.mxu0 0
    %533 = vmatpush1.bf16.msra.mxu0 0
    %534 = vmatprep.subr.bf16.mxu0 0
    %535 = vmatpush1.bf16.msra.mxu0 0
    %536 = vmatprep.subr.bf16.mxu0 0
    %537 = vmatpush1.bf16.msra.mxu0 0
    %538 = vmatprep.subr.bf16.mxu0 0
    %539 = vmatpush1.bf16.msra.mxu0 0
    %540 = vmatprep.mubr.bf16.mxu0 0
    %541 = vmatmul.mubr.bf16.gmra.mrb[0].mxu0 %v434
    %v542 = vpop.f32.mrb[0].mxu0
    %v543 = vadd.f32 %v458, %v542
    %v544 = vpop.f32.mrb[0].mxu0
    %v545 = vpop.f32.mrb[0].mxu0
    %v546 = vpop.f32.mrb[0].mxu0
    %547 = vdwg.mxu0
    %vm548 = vcmp.gt.f32.partialorder %v543, 0.0
    %v549 = vmul.f32 %v543, 0.2
    %v550 = vsel %vm548, %v543, %v549
    %v551 = vpack.c.bf16 %v550, %v550
    %s552 = scalar_lea.vmem [#allocation7], 64
    %v553 = vld [vmem:[%s552] sm:$0xf]
    %v554 = vld [vmem:[%s552 + $0x4] sm:$0xf]
    %v555 = vld [vmem:[%s552 + $0x8] sm:$0xf]
    %v556 = vld [vmem:[%s552 + $0xc] sm:$0xf]
    %v557 = vld [vmem:[%s552 + $0x10] sm:$0xf]
    %v558 = vld [vmem:[%s552 + $0x14] sm:$0xf]
    %v559 = vld [vmem:[%s552 + $0x18] sm:$0xf]
    %v560 = vld [vmem:[%s552 + $0x1c] sm:$0xf]
    %v561 = vld [vmem:[%s552 + $0x20] sm:$0xf]
    %v562 = vld [vmem:[%s552 + $0x24] sm:$0xf]
    %v563 = vld [vmem:[%s552 + $0x28] sm:$0xf]
    %v564 = vld [vmem:[%s552 + $0x2c] sm:$0xf]
    %v565 = vld [vmem:[%s552 + $0x30] sm:$0xf]
    %v566 = vld [vmem:[%s552 + $0x34] sm:$0xf]
    %v567 = vld [vmem:[%s552 + $0x38] sm:$0xf]
    %v568 = vld [vmem:[%s552 + $0x3c] sm:$0xf]
    %s569 = scalar_lea.vmem %s6, 1
    %v570 = vld [vmem:[%s569] sm:$0x1]
    %v572 = vlaneseq
    %v573 = vshrl.u32 %v572, 7
    %v574 = vsub.s32 0, %v573
    %v575 = vrot.slane %v570, %v574
    %v593 = vunpack.c.l.b16 %v553
    %v594 = vunpack.c.l.b16 %v554
    %v595 = vunpack.c.l.b16 %v555
    %v596 = vunpack.c.l.b16 %v556
    %v597 = vunpack.c.l.b16 %v557
    %v598 = vunpack.c.l.b16 %v558
    %v599 = vunpack.c.l.b16 %v559
    %v600 = vunpack.c.l.b16 %v560
    %v601 = vunpack.c.l.b16 %v561
    %v602 = vunpack.c.l.b16 %v562
    %v603 = vunpack.c.l.b16 %v563
    %v604 = vunpack.c.l.b16 %v564
    %v605 = vunpack.c.l.b16 %v565
    %v606 = vunpack.c.l.b16 %v566
    %v607 = vunpack.c.l.b16 %v567
    %v608 = vunpack.c.l.b16 %v568
    %v609 = vpack.c.b16 %v594, %v593
    %v610 = vpack.c.b16 %v596, %v595
    %v611 = vpack.c.b16 %v598, %v597
    %v612 = vpack.c.b16 %v600, %v599
    %v613 = vpack.c.b16 %v602, %v601
    %v614 = vpack.c.b16 %v604, %v603
    %v615 = vpack.c.b16 %v606, %v605
    %v616 = vpack.c.b16 %v608, %v607
    %625 = vmatprep.subr.bf16.mxu0 0
    %626 = vmatpush1.bf16.msra.mxu0 %v609
    %627 = vmatprep.subr.bf16.mxu0 0
    %628 = vmatpush1.bf16.msra.mxu0 %v610
    %629 = vmatprep.subr.bf16.mxu0 0
    %630 = vmatpush1.bf16.msra.mxu0 %v611
    %631 = vmatprep.subr.bf16.mxu0 0
    %632 = vmatpush1.bf16.msra.mxu0 %v612
    %633 = vmatprep.subr.bf16.mxu0 0
    %634 = vmatpush1.bf16.msra.mxu0 %v613
    %635 = vmatprep.subr.bf16.mxu0 0
    %636 = vmatpush1.bf16.msra.mxu0 %v614
    %637 = vmatprep.subr.bf16.mxu0 0
    %638 = vmatpush1.bf16.msra.mxu0 %v615
    %639 = vmatprep.subr.bf16.mxu0 0
    %640 = vmatpush1.bf16.msra.mxu0 %v616
    %641 = vmatprep.subr.bf16.mxu0 0
    %642 = vmatpush1.bf16.msra.mxu0 0
    %643 = vmatprep.subr.bf16.mxu0 0
    %644 = vmatpush1.bf16.msra.mxu0 0
    %645 = vmatprep.subr.bf16.mxu0 0
    %646 = vmatpush1.bf16.msra.mxu0 0
    %647 = vmatprep.subr.bf16.mxu0 0
    %648 = vmatpush1.bf16.msra.mxu0 0
    %649 = vmatprep.subr.bf16.mxu0 0
    %650 = vmatpush1.bf16.msra.mxu0 0
    %651 = vmatprep.subr.bf16.mxu0 0
    %652 = vmatpush1.bf16.msra.mxu0 0
    %653 = vmatprep.subr.bf16.mxu0 0
    %654 = vmatpush1.bf16.msra.mxu0 0
    %655 = vmatprep.subr.bf16.mxu0 0
    %656 = vmatpush1.bf16.msra.mxu0 0
    %657 = vmatprep.mubr.bf16.mxu0 0
    %658 = vmatmul.mubr.bf16.gmra.mrb[0].mxu0 %v551
    %v659 = vpop.f32.mrb[0].mxu0
    %v660 = vadd.f32 %v575, %v659
    %v661 = vpop.f32.mrb[0].mxu0
    %v662 = vpop.f32.mrb[0].mxu0
    %v663 = vpop.f32.mrb[0].mxu0
    %664 = vdwg.mxu0
    %v665 = vadd.f32 %v660, %v433
    %vm666 = vcmp.gt.f32.partialorder %v665, 0.0
    %v667 = vmul.f32 %v665, 0.2
    %v668 = vsel %vm666, %v665, %v667
    %v669 = vpack.c.bf16 %v668, %v668
    %v670 = vld [vmem:[#allocation8] sm:$0xf]
    %v671 = vld [vmem:[#allocation8 + $0x4] sm:$0xf]
    %v672 = vld [vmem:[#allocation8 + $0x8] sm:$0xf]
    %v673 = vld [vmem:[#allocation8 + $0xc] sm:$0xf]
    %v674 = vld [vmem:[#allocation8 + $0x10] sm:$0xf]
    %v675 = vld [vmem:[#allocation8 + $0x14] sm:$0xf]
    %v676 = vld [vmem:[#allocation8 + $0x18] sm:$0xf]
    %v677 = vld [vmem:[#allocation8 + $0x1c] sm:$0xf]
    %v678 = vld [vmem:[#allocation8 + $0x20] sm:$0xf]
    %v679 = vld [vmem:[#allocation8 + $0x24] sm:$0xf]
    %v680 = vld [vmem:[#allocation8 + $0x28] sm:$0xf]
    %v681 = vld [vmem:[#allocation8 + $0x2c] sm:$0xf]
    %v682 = vld [vmem:[#allocation8 + $0x30] sm:$0xf]
    %v683 = vld [vmem:[#allocation8 + $0x34] sm:$0xf]
    %v684 = vld [vmem:[#allocation8 + $0x38] sm:$0xf]
    %v685 = vld [vmem:[#allocation8 + $0x3c] sm:$0xf]
    %v686 = vld [vmem:[%s8] sm:$0x1]
    %v688 = vlaneseq
    %v689 = vshrl.u32 %v688, 7
    %v690 = vsub.s32 0, %v689
    %v691 = vrot.slane %v686, %v690
    %v709 = vunpack.c.l.b16 %v670
    %v710 = vunpack.c.l.b16 %v671
    %v711 = vunpack.c.l.b16 %v672
    %v712 = vunpack.c.l.b16 %v673
    %v713 = vunpack.c.l.b16 %v674
    %v714 = vunpack.c.l.b16 %v675
    %v715 = vunpack.c.l.b16 %v676
    %v716 = vunpack.c.l.b16 %v677
    %v717 = vunpack.c.l.b16 %v678
    %v718 = vunpack.c.l.b16 %v679
    %v719 = vunpack.c.l.b16 %v680
    %v720 = vunpack.c.l.b16 %v681
    %v721 = vunpack.c.l.b16 %v682
    %v722 = vunpack.c.l.b16 %v683
    %v723 = vunpack.c.l.b16 %v684
    %v724 = vunpack.c.l.b16 %v685
    %v725 = vpack.c.b16 %v710, %v709
    %v726 = vpack.c.b16 %v712, %v711
    %v727 = vpack.c.b16 %v714, %v713
    %v728 = vpack.c.b16 %v716, %v715
    %v729 = vpack.c.b16 %v718, %v717
    %v730 = vpack.c.b16 %v720, %v719
    %v731 = vpack.c.b16 %v722, %v721
    %v732 = vpack.c.b16 %v724, %v723
    %741 = vmatprep.subr.bf16.mxu0 0
    %742 = vmatpush1.bf16.msra.mxu0 %v725
    %743 = vmatprep.subr.bf16.mxu0 0
    %744 = vmatpush1.bf16.msra.mxu0 %v726
    %745 = vmatprep.subr.bf16.mxu0 0
    %746 = vmatpush1.bf16.msra.mxu0 %v727
    %747 = vmatprep.subr.bf16.mxu0 0
    %748 = vmatpush1.bf16.msra.mxu0 %v728
    %749 = vmatprep.subr.bf16.mxu0 0
    %750 = vmatpush1.bf16.msra.mxu0 %v729
    %751 = vmatprep.subr.bf16.mxu0 0
    %752 = vmatpush1.bf16.msra.mxu0 %v730
    %753 = vmatprep.subr.bf16.mxu0 0
    %754 = vmatpush1.bf16.msra.mxu0 %v731
    %755 = vmatprep.subr.bf16.mxu0 0
    %756 = vmatpush1.bf16.msra.mxu0 %v732
    %757 = vmatprep.subr.bf16.mxu0 0
    %758 = vmatpush1.bf16.msra.mxu0 0
    %759 = vmatprep.subr.bf16.mxu0 0
    %760 = vmatpush1.bf16.msra.mxu0 0
    %761 = vmatprep.subr.bf16.mxu0 0
    %762 = vmatpush1.bf16.msra.mxu0 0
    %763 = vmatprep.subr.bf16.mxu0 0
    %764 = vmatpush1.bf16.msra.mxu0 0
    %765 = vmatprep.subr.bf16.mxu0 0
    %766 = vmatpush1.bf16.msra.mxu0 0
    %767 = vmatprep.subr.bf16.mxu0 0
    %768 = vmatpush1.bf16.msra.mxu0 0
    %769 = vmatprep.subr.bf16.mxu0 0
    %770 = vmatpush1.bf16.msra.mxu0 0
    %771 = vmatprep.subr.bf16.mxu0 0
    %772 = vmatpush1.bf16.msra.mxu0 0
    %773 = vmatprep.mubr.bf16.mxu0 0
    %774 = vmatmul.mubr.bf16.gmra.mrb[0].mxu0 %v669
    %v775 = vpop.f32.mrb[0].mxu0
    %v776 = vadd.f32 %v691, %v775
    %v777 = vpop.f32.mrb[0].mxu0
    %v778 = vpop.f32.mrb[0].mxu0
    %v779 = vpop.f32.mrb[0].mxu0
    %780 = vdwg.mxu0
    %781 = vst [vmem:[#allocation10] sm:$0xff] %v776
    // Predicated region
    $region54: #{run.1} parent=1 // pred_check
      _
    $region55: #{run.1} parent=1 // pred_check_branch
      %783 = sbr.rel (0) target = $region57
    $region56: #{run.1} parent=1 // pred_region
      %s785 = ssub.s32 128, 128
      %786 = vsyncadd [#allocation4], %s785
      %s788 = sshll.u32 [#allocation10], 4
      %s789 = int_to_ptr.vmem [resolvable:$true] %s788
      %791 = dma.vmem_to_hbm [thread:$0]  %s789, 128, %s9, [#allocation4]
    $region57: #{run.1} parent=1 // pred_fallthru
      _
    // Predicated region
    $region58: #{run.1} parent=1 // pred_check
      _
    $region59: #{run.1} parent=1 // pred_check_branch
      %793 = sbr.rel (0) target = $region61
    $region60: #{run.1} parent=1 // pred_region
      %794 = dma.done [#allocation4], 128
    $region61: #{run.1} parent=1 // pred_fallthru
      _
    %795 = vsyncpa [#allocation3], 1
    %796 = vsyncpa [#allocation6], 1
    %797 = vsyncpa [#allocation9], 1
    %798 = vsyncpa [#allocation4], 1

// kernel: run.1
$region0: #{run.1}
  #allocation0 [shape = 'u32[]', space=smem, size = 0x4, offset = 0x4, fixed_abs, tag = 'smem constant byte address 0x4 - core index']
  #allocation1 [shape = 'u32[144,128]{1,0:T(1,128)}', space=vmem, size = 0x12000, scoped, tag = 'internal scratch']
  %s0 = inlined_call_operand.vmem [shape: f32[8,128], index: 0, kind: input, shape index: {}]
  %s1 = inlined_call_operand.hbm [shape: bf16[128,128], index: 1, kind: input, shape index: {}]
  %s2 = inlined_call_operand.vmem [shape: f32[1,128], index: 2, kind: input, shape index: {}]
  %s3 = inlined_call_operand.hbm [shape: bf16[2,128,128], index: 3, kind: input, shape index: {}]
  %s4 = inlined_call_operand.vmem [shape: f32[2,1,128], index: 4, kind: input, shape index: {}]
  %s5 = inlined_call_operand.hbm [shape: bf16[2,128,128], index: 5, kind: input, shape index: {}]
  %s6 = inlined_call_operand.vmem [shape: f32[2,1,128], index: 6, kind: input, shape index: {}]
  %s7 = inlined_call_operand.hbm [shape: bf16[128,128], index: 7, kind: input, shape index: {}]
  %s8 = inlined_call_operand.vmem [shape: f32[1,128], index: 8, kind: input, shape index: {}]
  %s9 = inlined_call_operand.hbm [shape: f32[8,128], index: 9, kind: output, shape index: {}]
  %s10 = sld [smem:[#allocation0]]
  $region62: #{run.1} parent=0
    _
  %s12 = ssub.s32 1, %s10
  %s13 = scalar_select 0, %s12, %s10
  $region1: #{run.1} parent=0
    #allocation2 [shape = 'u8[32768]{0}', space=vmem, size = 0x8000, scoped, tag = 'input window, operand 1, single buffered']
    #allocation3 [shape = 's32[1]{0}', space=sflag, size = 0x4, scoped, tag = 'scoped memory for run.1']
    #allocation4 [shape = 's32[1]{0}', space=sflag, size = 0x4, scoped, tag = 'scoped memory for run.1']
    #allocation5 [shape = 'u8[65536]{0}', space=vmem, size = 0x10000, scoped, tag = 'input window, operand 3, single buffered']
    #allocation6 [shape = 's32[1]{0}', space=sflag, size = 0x4, scoped, tag = 'scoped memory for run.1']
    #allocation7 [shape = 'u8[65536]{0}', space=vmem, size = 0x10000, scoped, tag = 'input window, operand 5, single buffered']
    #allocation8 [shape = 'u8[32768]{0}', space=vmem, size = 0x8000, scoped, tag = 'input window, operand 7, single buffered']
    #allocation9 [shape = 's32[1]{0}', space=sflag, size = 0x4, scoped, tag = 'scoped memory for run.1']
    #allocation10 [shape = 'u8[4096]{0}', space=vmem, size = 0x1000, scoped, tag = 'output window, operand 0, single buffered']
    %14 = vsyncpa [#allocation3], 0
    %15 = vsyncpa [#allocation6], 0
    %16 = vsyncpa [#allocation9], 0
    %17 = vsyncpa [#allocation4], 0
    // Predicated region
    $region2: #{run.1} parent=1 // pred_check
      _
    $region3: #{run.1} parent=1 // pred_check_branch
      %19 = sbr.rel (0) target = $region5
    $region4: #{run.1} parent=1 // pred_region
      _
    $region5: #{run.1} parent=1 // pred_fallthru
      _
    // Predicated region
    $region6: #{run.1} parent=1 // pred_check
      _
    $region7: #{run.1} parent=1 // pred_check_branch
      %21 = sbr.rel (0) target = $region9
    $region8: #{run.1} parent=1 // pred_region
      %s23 = ssub.s32 1024, 1024
      %24 = vsyncadd [#allocation3], %s23
      %s25 = sshll.u32 [#allocation2], 4
      %s26 = int_to_ptr.vmem [resolvable:$true] %s25
      %31 = dma.hbm_to_vmem [thread:$0]  %s1, 1024, %s26, [#allocation3], 64, 64, 4
    $region9: #{run.1} parent=1 // pred_fallthru
      _
    // Predicated region
    $region10: #{run.1} parent=1 // pred_check
      _
    $region11: #{run.1} parent=1 // pred_check_branch
      %33 = sbr.rel (0) target = $region13
    $region12: #{run.1} parent=1 // pred_region
      _
    $region13: #{run.1} parent=1 // pred_fallthru
      _
    // Predicated region
    $region14: #{run.1} parent=1 // pred_check
      _
    $region15: #{run.1} parent=1 // pred_check_branch
      %35 = sbr.rel (0) target = $region17
    $region16: #{run.1} parent=1 // pred_region
      %s37 = ssub.s32 2048, 2048
      %38 = vsyncadd [#allocation6], %s37
      %s39 = sshll.u32 [#allocation5], 4
      %s40 = int_to_ptr.vmem [resolvable:$true] %s39
      %45 = dma.hbm_to_vmem [thread:$0]  %s3, 2048, %s40, [#allocation6], 64, 64, 4
    $region17: #{run.1} parent=1 // pred_fallthru
      _
    // Predicated region
    $region18: #{run.1} parent=1 // pred_check
      _
    $region19: #{run.1} parent=1 // pred_check_branch
      %47 = sbr.rel (0) target = $region21
    $region20: #{run.1} parent=1 // pred_region
      _
    $region21: #{run.1} parent=1 // pred_fallthru
      _
    // Predicated region
    $region22: #{run.1} parent=1 // pred_check
      _
    $region23: #{run.1} parent=1 // pred_check_branch
      %49 = sbr.rel (0) target = $region25
    $region24: #{run.1} parent=1 // pred_region
      %s51 = ssub.s32 2048, 2048
      %52 = vsyncadd [#allocation6], %s51
      %s53 = sshll.u32 [#allocation7], 4
      %s54 = int_to_ptr.vmem [resolvable:$true] %s53
      %59 = dma.hbm_to_vmem [thread:$0]  %s5, 2048, %s54, [#allocation6], 64, 64, 4
    $region25: #{run.1} parent=1 // pred_fallthru
      _
    // Predicated region
    $region26: #{run.1} parent=1 // pred_check
      _
    $region27: #{run.1} parent=1 // pred_check_branch
      %61 = sbr.rel (0) target = $region29
    $region28: #{run.1} parent=1 // pred_region
      _
    $region29: #{run.1} parent=1 // pred_fallthru
      _
    // Predicated region
    $region30: #{run.1} parent=1 // pred_check
      _
    $region31: #{run.1} parent=1 // pred_check_branch
      %63 = sbr.rel (0) target = $region33
    $region32: #{run.1} parent=1 // pred_region
      %s65 = ssub.s32 1024, 1024
      %66 = vsyncadd [#allocation9], %s65
      %s67 = sshll.u32 [#allocation8], 4
      %s68 = int_to_ptr.vmem [resolvable:$true] %s67
      %73 = dma.hbm_to_vmem [thread:$0]  %s7, 1024, %s68, [#allocation9], 64, 64, 4
    $region33: #{run.1} parent=1 // pred_fallthru
      _
    // Predicated region
    $region34: #{run.1} parent=1 // pred_check
      _
    $region35: #{run.1} parent=1 // pred_check_branch
      %75 = sbr.rel (0) target = $region37
    $region36: #{run.1} parent=1 // pred_region
      _
    $region37: #{run.1} parent=1 // pred_fallthru
      _
    // Predicated region
    $region38: #{run.1} parent=1 // pred_check
      _
    $region39: #{run.1} parent=1 // pred_check_branch
      %77 = sbr.rel (0) target = $region41
    $region40: #{run.1} parent=1 // pred_region
      %78 = dma.done [#allocation3], 1024
    $region41: #{run.1} parent=1 // pred_fallthru
      _
    // Predicated region
    $region42: #{run.1} parent=1 // pred_check
      _
    $region43: #{run.1} parent=1 // pred_check_branch
      %80 = sbr.rel (0) target = $region45
    $region44: #{run.1} parent=1 // pred_region
      %81 = dma.done [#allocation6], 2048
    $region45: #{run.1} parent=1 // pred_fallthru
      _
    // Predicated region
    $region46: #{run.1} parent=1 // pred_check
      _
    $region47: #{run.1} parent=1 // pred_check_branch
      %83 = sbr.rel (0) target = $region49
    $region48: #{run.1} parent=1 // pred_region
      %84 = dma.done [#allocation6], 2048
    $region49: #{run.1} parent=1 // pred_fallthru
      _
    // Predicated region
    $region50: #{run.1} parent=1 // pred_check
      _
    $region51: #{run.1} parent=1 // pred_check_branch
      %86 = sbr.rel (0) target = $region53
    $region52: #{run.1} parent=1 // pred_region
      %87 = dma.done [#allocation9], 1024
    $region53: #{run.1} parent=1 // pred_fallthru
      _
    %v89 = vld [vmem:[%s0] sm:$0xff]
    %v90 = vpack.c.bf16 %v89, %v89
    %v91 = vld [vmem:[#allocation2] sm:$0xf]
    %v92 = vld [vmem:[#allocation2 + $0x4] sm:$0xf]
    %v93 = vld [vmem:[#allocation2 + $0x8] sm:$0xf]
    %v94 = vld [vmem:[#allocation2 + $0xc] sm:$0xf]
    %v95 = vld [vmem:[#allocation2 + $0x10] sm:$0xf]
    %v96 = vld [vmem:[#allocation2 + $0x14] sm:$0xf]
    %v97 = vld [vmem:[#allocation2 + $0x18] sm:$0xf]
    %v98 = vld [vmem:[#allocation2 + $0x1c] sm:$0xf]
    %v99 = vld [vmem:[#allocation2 + $0x20] sm:$0xf]
    %v100 = vld [vmem:[#allocation2 + $0x24] sm:$0xf]
    %v101 = vld [vmem:[#allocation2 + $0x28] sm:$0xf]
    %v102 = vld [vmem:[#allocation2 + $0x2c] sm:$0xf]
    %v103 = vld [vmem:[#allocation2 + $0x30] sm:$0xf]
    %v104 = vld [vmem:[#allocation2 + $0x34] sm:$0xf]
    %v105 = vld [vmem:[#allocation2 + $0x38] sm:$0xf]
    %v106 = vld [vmem:[#allocation2 + $0x3c] sm:$0xf]
    %v107 = vld [vmem:[%s2] sm:$0x1]
    %v109 = vlaneseq
    %v110 = vshrl.u32 %v109, 7
    %v111 = vsub.s32 0, %v110
    %v112 = vrot.slane %v107, %v111
    %v130 = vunpack.c.l.b16 %v91
    %v131 = vunpack.c.l.b16 %v92
    %v132 = vunpack.c.l.b16 %v93
    %v133 = vunpack.c.l.b16 %v94
    %v134 = vunpack.c.l.b16 %v95
    %v135 = vunpack.c.l.b16 %v96
    %v136 = vunpack.c.l.b16 %v97
    %v137 = vunpack.c.l.b16 %v98
    %v138 = vunpack.c.l.b16 %v99
    %v139 = vunpack.c.l.b16 %v100
    %v140 = vunpack.c.l.b16 %v101
    %v141 = vunpack.c.l.b16 %v102
    %v142 = vunpack.c.l.b16 %v103
    %v143 = vunpack.c.l.b16 %v104
    %v144 = vunpack.c.l.b16 %v105
    %v145 = vunpack.c.l.b16 %v106
    %v146 = vpack.c.b16 %v131, %v130
    %v147 = vpack.c.b16 %v133, %v132
    %v148 = vpack.c.b16 %v135, %v134
    %v149 = vpack.c.b16 %v137, %v136
    %v150 = vpack.c.b16 %v139, %v138
    %v151 = vpack.c.b16 %v141, %v140
    %v152 = vpack.c.b16 %v143, %v142
    %v153 = vpack.c.b16 %v145, %v144
    %162 = vmatprep.subr.bf16.mxu0 0
    %163 = vmatpush1.bf16.msra.mxu0 %v146
    %164 = vmatprep.subr.bf16.mxu0 0
    %165 = vmatpush1.bf16.msra.mxu0 %v147
    %166 = vmatprep.subr.bf16.mxu0 0
    %167 = vmatpush1.bf16.msra.mxu0 %v148
    %168 = vmatprep.subr.bf16.mxu0 0
    %169 = vmatpush1.bf16.msra.mxu0 %v149
    %170 = vmatprep.subr.bf16.mxu0 0
    %171 = vmatpush1.bf16.msra.mxu0 %v150
    %172 = vmatprep.subr.bf16.mxu0 0
    %173 = vmatpush1.bf16.msra.mxu0 %v151
    %174 = vmatprep.subr.bf16.mxu0 0
    %175 = vmatpush1.bf16.msra.mxu0 %v152
    %176 = vmatprep.subr.bf16.mxu0 0
    %177 = vmatpush1.bf16.msra.mxu0 %v153
    %178 = vmatprep.subr.bf16.mxu0 0
    %179 = vmatpush1.bf16.msra.mxu0 0
    %180 = vmatprep.subr.bf16.mxu0 0
    %181 = vmatpush1.bf16.msra.mxu0 0
    %182 = vmatprep.subr.bf16.mxu0 0
    %183 = vmatpush1.bf16.msra.mxu0 0
    %184 = vmatprep.subr.bf16.mxu0 0
    %185 = vmatpush1.bf16.msra.mxu0 0
    %186 = vmatprep.subr.bf16.mxu0 0
    %187 = vmatpush1.bf16.msra.mxu0 0
    %188 = vmatprep.subr.bf16.mxu0 0
    %189 = vmatpush1.bf16.msra.mxu0 0
    %190 = vmatprep.subr.bf16.mxu0 0
    %191 = vmatpush1.bf16.msra.mxu0 0
    %192 = vmatprep.subr.bf16.mxu0 0
    %193 = vmatpush1.bf16.msra.mxu0 0
    %194 = vmatprep.mubr.bf16.mxu0 0
    %195 = vmatmul.mubr.bf16.gmra.mrb[0].mxu0 %v90
    %v196 = vpop.f32.mrb[0].mxu0
    %v197 = vadd.f32 %v112, %v196
    %v198 = vpop.f32.mrb[0].mxu0
    %v199 = vpop.f32.mrb[0].mxu0
    %v200 = vpop.f32.mrb[0].mxu0
    %201 = vdwg.mxu0
    %v202 = vtanh.pop %v197
    %v203 = vpack.c.bf16 %v202, %v202
    %v204 = vld [vmem:[#allocation5] sm:$0xf]
    %v205 = vld [vmem:[#allocation5 + $0x4] sm:$0xf]
    %v206 = vld [vmem:[#allocation5 + $0x8] sm:$0xf]
    %v207 = vld [vmem:[#allocation5 + $0xc] sm:$0xf]
    %v208 = vld [vmem:[#allocation5 + $0x10] sm:$0xf]
    %v209 = vld [vmem:[#allocation5 + $0x14] sm:$0xf]
    %v210 = vld [vmem:[#allocation5 + $0x18] sm:$0xf]
    %v211 = vld [vmem:[#allocation5 + $0x1c] sm:$0xf]
    %v212 = vld [vmem:[#allocation5 + $0x20] sm:$0xf]
    %v213 = vld [vmem:[#allocation5 + $0x24] sm:$0xf]
    %v214 = vld [vmem:[#allocation5 + $0x28] sm:$0xf]
    %v215 = vld [vmem:[#allocation5 + $0x2c] sm:$0xf]
    %v216 = vld [vmem:[#allocation5 + $0x30] sm:$0xf]
    %v217 = vld [vmem:[#allocation5 + $0x34] sm:$0xf]
    %v218 = vld [vmem:[#allocation5 + $0x38] sm:$0xf]
    %v219 = vld [vmem:[#allocation5 + $0x3c] sm:$0xf]
    %v220 = vld [vmem:[%s4] sm:$0x1]
    %v222 = vlaneseq
    %v223 = vshrl.u32 %v222, 7
    %v224 = vsub.s32 0, %v223
    %v225 = vrot.slane %v220, %v224
    %v243 = vunpack.c.l.b16 %v204
    %v244 = vunpack.c.l.b16 %v205
    %v245 = vunpack.c.l.b16 %v206
    %v246 = vunpack.c.l.b16 %v207
    %v247 = vunpack.c.l.b16 %v208
    %v248 = vunpack.c.l.b16 %v209
    %v249 = vunpack.c.l.b16 %v210
    %v250 = vunpack.c.l.b16 %v211
    %v251 = vunpack.c.l.b16 %v212
    %v252 = vunpack.c.l.b16 %v213
    %v253 = vunpack.c.l.b16 %v214
    %v254 = vunpack.c.l.b16 %v215
    %v255 = vunpack.c.l.b16 %v216
    %v256 = vunpack.c.l.b16 %v217
    %v257 = vunpack.c.l.b16 %v218
    %v258 = vunpack.c.l.b16 %v219
    %v259 = vpack.c.b16 %v244, %v243
    %v260 = vpack.c.b16 %v246, %v245
    %v261 = vpack.c.b16 %v248, %v247
    %v262 = vpack.c.b16 %v250, %v249
    %v263 = vpack.c.b16 %v252, %v251
    %v264 = vpack.c.b16 %v254, %v253
    %v265 = vpack.c.b16 %v256, %v255
    %v266 = vpack.c.b16 %v258, %v257
    %275 = vmatprep.subr.bf16.mxu0 0
    %276 = vmatpush1.bf16.msra.mxu0 %v259
    %277 = vmatprep.subr.bf16.mxu0 0
    %278 = vmatpush1.bf16.msra.mxu0 %v260
    %279 = vmatprep.subr.bf16.mxu0 0
    %280 = vmatpush1.bf16.msra.mxu0 %v261
    %281 = vmatprep.subr.bf16.mxu0 0
    %282 = vmatpush1.bf16.msra.mxu0 %v262
    %283 = vmatprep.subr.bf16.mxu0 0
    %284 = vmatpush1.bf16.msra.mxu0 %v263
    %285 = vmatprep.subr.bf16.mxu0 0
    %286 = vmatpush1.bf16.msra.mxu0 %v264
    %287 = vmatprep.subr.bf16.mxu0 0
    %288 = vmatpush1.bf16.msra.mxu0 %v265
    %289 = vmatprep.subr.bf16.mxu0 0
    %290 = vmatpush1.bf16.msra.mxu0 %v266
    %291 = vmatprep.subr.bf16.mxu0 0
    %292 = vmatpush1.bf16.msra.mxu0 0
    %293 = vmatprep.subr.bf16.mxu0 0
    %294 = vmatpush1.bf16.msra.mxu0 0
    %295 = vmatprep.subr.bf16.mxu0 0
    %296 = vmatpush1.bf16.msra.mxu0 0
    %297 = vmatprep.subr.bf16.mxu0 0
    %298 = vmatpush1.bf16.msra.mxu0 0
    %299 = vmatprep.subr.bf16.mxu0 0
    %300 = vmatpush1.bf16.msra.mxu0 0
    %301 = vmatprep.subr.bf16.mxu0 0
    %302 = vmatpush1.bf16.msra.mxu0 0
    %303 = vmatprep.subr.bf16.mxu0 0
    %304 = vmatpush1.bf16.msra.mxu0 0
    %305 = vmatprep.subr.bf16.mxu0 0
    %306 = vmatpush1.bf16.msra.mxu0 0
    %307 = vmatprep.mubr.bf16.mxu0 0
    %308 = vmatmul.mubr.bf16.gmra.mrb[0].mxu0 %v203
    %v309 = vpop.f32.mrb[0].mxu0
    %v310 = vadd.f32 %v225, %v309
    %v311 = vpop.f32.mrb[0].mxu0
    %v312 = vpop.f32.mrb[0].mxu0
    %v313 = vpop.f32.mrb[0].mxu0
    %314 = vdwg.mxu0
    %vm315 = vcmp.gt.f32.partialorder %v310, 0.0
    %v316 = vmul.f32 %v310, 0.2
    %v317 = vsel %vm315, %v310, %v316
    %v318 = vpack.c.bf16 %v317, %v317
    %v319 = vld [vmem:[#allocation7] sm:$0xf]
    %v320 = vld [vmem:[#allocation7 + $0x4] sm:$0xf]
    %v321 = vld [vmem:[#allocation7 + $0x8] sm:$0xf]
    %v322 = vld [vmem:[#allocation7 + $0xc] sm:$0xf]
    %v323 = vld [vmem:[#allocation7 + $0x10] sm:$0xf]
    %v324 = vld [vmem:[#allocation7 + $0x14] sm:$0xf]
    %v325 = vld [vmem:[#allocation7 + $0x18] sm:$0xf]
    %v326 = vld [vmem:[#allocation7 + $0x1c] sm:$0xf]
    %v327 = vld [vmem:[#allocation7 + $0x20] sm:$0xf]
    %v328 = vld [vmem:[#allocation7 + $0x24] sm:$0xf]
    %v329 = vld [vmem:[#allocation7 + $0x28] sm:$0xf]
    %v330 = vld [vmem:[#allocation7 + $0x2c] sm:$0xf]
    %v331 = vld [vmem:[#allocation7 + $0x30] sm:$0xf]
    %v332 = vld [vmem:[#allocation7 + $0x34] sm:$0xf]
    %v333 = vld [vmem:[#allocation7 + $0x38] sm:$0xf]
    %v334 = vld [vmem:[#allocation7 + $0x3c] sm:$0xf]
    %v335 = vld [vmem:[%s6] sm:$0x1]
    %v337 = vlaneseq
    %v338 = vshrl.u32 %v337, 7
    %v339 = vsub.s32 0, %v338
    %v340 = vrot.slane %v335, %v339
    %v358 = vunpack.c.l.b16 %v319
    %v359 = vunpack.c.l.b16 %v320
    %v360 = vunpack.c.l.b16 %v321
    %v361 = vunpack.c.l.b16 %v322
    %v362 = vunpack.c.l.b16 %v323
    %v363 = vunpack.c.l.b16 %v324
    %v364 = vunpack.c.l.b16 %v325
    %v365 = vunpack.c.l.b16 %v326
    %v366 = vunpack.c.l.b16 %v327
    %v367 = vunpack.c.l.b16 %v328
    %v368 = vunpack.c.l.b16 %v329
    %v369 = vunpack.c.l.b16 %v330
    %v370 = vunpack.c.l.b16 %v331
    %v371 = vunpack.c.l.b16 %v332
    %v372 = vunpack.c.l.b16 %v333
    %v373 = vunpack.c.l.b16 %v334
    %v374 = vpack.c.b16 %v359, %v358
    %v375 = vpack.c.b16 %v361, %v360
    %v376 = vpack.c.b16 %v363, %v362
    %v377 = vpack.c.b16 %v365, %v364
    %v378 = vpack.c.b16 %v367, %v366
    %v379 = vpack.c.b16 %v369, %v368
    %v380 = vpack.c.b16 %v371, %v370
    %v381 = vpack.c.b16 %v373, %v372
    %390 = vmatprep.subr.bf16.mxu0 0
    %391 = vmatpush1.bf16.msra.mxu0 %v374
    %392 = vmatprep.subr.bf16.mxu0 0
    %393 = vmatpush1.bf16.msra.mxu0 %v375
    %394 = vmatprep.subr.bf16.mxu0 0
    %395 = vmatpush1.bf16.msra.mxu0 %v376
    %396 = vmatprep.subr.bf16.mxu0 0
    %397 = vmatpush1.bf16.msra.mxu0 %v377
    %398 = vmatprep.subr.bf16.mxu0 0
    %399 = vmatpush1.bf16.msra.mxu0 %v378
    %400 = vmatprep.subr.bf16.mxu0 0
    %401 = vmatpush1.bf16.msra.mxu0 %v379
    %402 = vmatprep.subr.bf16.mxu0 0
    %403 = vmatpush1.bf16.msra.mxu0 %v380
    %404 = vmatprep.subr.bf16.mxu0 0
    %405 = vmatpush1.bf16.msra.mxu0 %v381
    %406 = vmatprep.subr.bf16.mxu0 0
    %407 = vmatpush1.bf16.msra.mxu0 0
    %408 = vmatprep.subr.bf16.mxu0 0
    %409 = vmatpush1.bf16.msra.mxu0 0
    %410 = vmatprep.subr.bf16.mxu0 0
    %411 = vmatpush1.bf16.msra.mxu0 0
    %412 = vmatprep.subr.bf16.mxu0 0
    %413 = vmatpush1.bf16.msra.mxu0 0
    %414 = vmatprep.subr.bf16.mxu0 0
    %415 = vmatpush1.bf16.msra.mxu0 0
    %416 = vmatprep.subr.bf16.mxu0 0
    %417 = vmatpush1.bf16.msra.mxu0 0
    %418 = vmatprep.subr.bf16.mxu0 0
    %419 = vmatpush1.bf16.msra.mxu0 0
    %420 = vmatprep.subr.bf16.mxu0 0
    %421 = vmatpush1.bf16.msra.mxu0 0
    %422 = vmatprep.mubr.bf16.mxu0 0
    %423 = vmatmul.mubr.bf16.gmra.mrb[0].mxu0 %v318
    %v424 = vpop.f32.mrb[0].mxu0
    %v425 = vadd.f32 %v340, %v424
    %v426 = vpop.f32.mrb[0].mxu0
    %v427 = vpop.f32.mrb[0].mxu0
    %v428 = vpop.f32.mrb[0].mxu0
    %429 = vdwg.mxu0
    %v430 = vadd.f32 %v425, %v202
    %vm431 = vcmp.gt.f32.partialorder %v430, 0.0
    %v432 = vmul.f32 %v430, 0.2
    %v433 = vsel %vm431, %v430, %v432
    %v434 = vpack.c.bf16 %v433, %v433
    %s435 = scalar_lea.vmem [#allocation5], 64
    %v436 = vld [vmem:[%s435] sm:$0xf]
    %v437 = vld [vmem:[%s435 + $0x4] sm:$0xf]
    %v438 = vld [vmem:[%s435 + $0x8] sm:$0xf]
    %v439 = vld [vmem:[%s435 + $0xc] sm:$0xf]
    %v440 = vld [vmem:[%s435 + $0x10] sm:$0xf]
    %v441 = vld [vmem:[%s435 + $0x14] sm:$0xf]
    %v442 = vld [vmem:[%s435 + $0x18] sm:$0xf]
    %v443 = vld [vmem:[%s435 + $0x1c] sm:$0xf]
    %v444 = vld [vmem:[%s435 + $0x20] sm:$0xf]
    %v445 = vld [vmem:[%s435 + $0x24] sm:$0xf]
    %v446 = vld [vmem:[%s435 + $0x28] sm:$0xf]
    %v447 = vld [vmem:[%s435 + $0x2c] sm:$0xf]
    %v448 = vld [vmem:[%s435 + $0x30] sm:$0xf]
    %v449 = vld [vmem:[%s435 + $0x34] sm:$0xf]
    %v450 = vld [vmem:[%s435 + $0x38] sm:$0xf]
    %v451 = vld [vmem:[%s435 + $0x3c] sm:$0xf]
    %s452 = scalar_lea.vmem %s4, 1
    %v453 = vld [vmem:[%s452] sm:$0x1]
    %v455 = vlaneseq
    %v456 = vshrl.u32 %v455, 7
    %v457 = vsub.s32 0, %v456
    %v458 = vrot.slane %v453, %v457
    %v476 = vunpack.c.l.b16 %v436
    %v477 = vunpack.c.l.b16 %v437
    %v478 = vunpack.c.l.b16 %v438
    %v479 = vunpack.c.l.b16 %v439
    %v480 = vunpack.c.l.b16 %v440
    %v481 = vunpack.c.l.b16 %v441
    %v482 = vunpack.c.l.b16 %v442
    %v483 = vunpack.c.l.b16 %v443
    %v484 = vunpack.c.l.b16 %v444
    %v485 = vunpack.c.l.b16 %v445
    %v486 = vunpack.c.l.b16 %v446
    %v487 = vunpack.c.l.b16 %v447
    %v488 = vunpack.c.l.b16 %v448
    %v489 = vunpack.c.l.b16 %v449
    %v490 = vunpack.c.l.b16 %v450
    %v491 = vunpack.c.l.b16 %v451
    %v492 = vpack.c.b16 %v477, %v476
    %v493 = vpack.c.b16 %v479, %v478
    %v494 = vpack.c.b16 %v481, %v480
    %v495 = vpack.c.b16 %v483, %v482
    %v496 = vpack.c.b16 %v485, %v484
    %v497 = vpack.c.b16 %v487, %v486
    %v498 = vpack.c.b16 %v489, %v488
    %v499 = vpack.c.b16 %v491, %v490
    %508 = vmatprep.subr.bf16.mxu0 0
    %509 = vmatpush1.bf16.msra.mxu0 %v492
    %510 = vmatprep.subr.bf16.mxu0 0
    %511 = vmatpush1.bf16.msra.mxu0 %v493
    %512 = vmatprep.subr.bf16.mxu0 0
    %513 = vmatpush1.bf16.msra.mxu0 %v494
    %514 = vmatprep.subr.bf16.mxu0 0
    %515 = vmatpush1.bf16.msra.mxu0 %v495
    %516 = vmatprep.subr.bf16.mxu0 0
    %517 = vmatpush1.bf16.msra.mxu0 %v496
    %518 = vmatprep.subr.bf16.mxu0 0
    %519 = vmatpush1.bf16.msra.mxu0 %v497
    %520 = vmatprep.subr.bf16.mxu0 0
    %521 = vmatpush1.bf16.msra.mxu0 %v498
    %522 = vmatprep.subr.bf16.mxu0 0
    %523 = vmatpush1.bf16.msra.mxu0 %v499
    %524 = vmatprep.subr.bf16.mxu0 0
    %525 = vmatpush1.bf16.msra.mxu0 0
    %526 = vmatprep.subr.bf16.mxu0 0
    %527 = vmatpush1.bf16.msra.mxu0 0
    %528 = vmatprep.subr.bf16.mxu0 0
    %529 = vmatpush1.bf16.msra.mxu0 0
    %530 = vmatprep.subr.bf16.mxu0 0
    %531 = vmatpush1.bf16.msra.mxu0 0
    %532 = vmatprep.subr.bf16.mxu0 0
    %533 = vmatpush1.bf16.msra.mxu0 0
    %534 = vmatprep.subr.bf16.mxu0 0
    %535 = vmatpush1.bf16.msra.mxu0 0
    %536 = vmatprep.subr.bf16.mxu0 0
    %537 = vmatpush1.bf16.msra.mxu0 0
    %538 = vmatprep.subr.bf16.mxu0 0
    %539 = vmatpush1.bf16.msra.mxu0 0
    %540 = vmatprep.mubr.bf16.mxu0 0
    %541 = vmatmul.mubr.bf16.gmra.mrb[0].mxu0 %v434
    %v542 = vpop.f32.mrb[0].mxu0
    %v543 = vadd.f32 %v458, %v542
    %v544 = vpop.f32.mrb[0].mxu0
    %v545 = vpop.f32.mrb[0].mxu0
    %v546 = vpop.f32.mrb[0].mxu0
    %547 = vdwg.mxu0
    %vm548 = vcmp.gt.f32.partialorder %v543, 0.0
    %v549 = vmul.f32 %v543, 0.2
    %v550 = vsel %vm548, %v543, %v549
    %v551 = vpack.c.bf16 %v550, %v550
    %s552 = scalar_lea.vmem [#allocation7], 64
    %v553 = vld [vmem:[%s552] sm:$0xf]
    %v554 = vld [vmem:[%s552 + $0x4] sm:$0xf]
    %v555 = vld [vmem:[%s552 + $0x8] sm:$0xf]
    %v556 = vld [vmem:[%s552 + $0xc] sm:$0xf]
    %v557 = vld [vmem:[%s552 + $0x10] sm:$0xf]
    %v558 = vld [vmem:[%s552 + $0x14] sm:$0xf]
    %v559 = vld [vmem:[%s552 + $0x18] sm:$0xf]
    %v560 = vld [vmem:[%s552 + $0x1c] sm:$0xf]
    %v561 = vld [vmem:[%s552 + $0x20] sm:$0xf]
    %v562 = vld [vmem:[%s552 + $0x24] sm:$0xf]
    %v563 = vld [vmem:[%s552 + $0x28] sm:$0xf]
    %v564 = vld [vmem:[%s552 + $0x2c] sm:$0xf]
    %v565 = vld [vmem:[%s552 + $0x30] sm:$0xf]
    %v566 = vld [vmem:[%s552 + $0x34] sm:$0xf]
    %v567 = vld [vmem:[%s552 + $0x38] sm:$0xf]
    %v568 = vld [vmem:[%s552 + $0x3c] sm:$0xf]
    %s569 = scalar_lea.vmem %s6, 1
    %v570 = vld [vmem:[%s569] sm:$0x1]
    %v572 = vlaneseq
    %v573 = vshrl.u32 %v572, 7
    %v574 = vsub.s32 0, %v573
    %v575 = vrot.slane %v570, %v574
    %v593 = vunpack.c.l.b16 %v553
    %v594 = vunpack.c.l.b16 %v554
    %v595 = vunpack.c.l.b16 %v555
    %v596 = vunpack.c.l.b16 %v556
    %v597 = vunpack.c.l.b16 %v557
    %v598 = vunpack.c.l.b16 %v558
    %v599 = vunpack.c.l.b16 %v559
    %v600 = vunpack.c.l.b16 %v560
    %v601 = vunpack.c.l.b16 %v561
    %v602 = vunpack.c.l.b16 %v562
    %v603 = vunpack.c.l.b16 %v563
    %v604 = vunpack.c.l.b16 %v564
    %v605 = vunpack.c.l.b16 %v565
    %v606 = vunpack.c.l.b16 %v566
    %v607 = vunpack.c.l.b16 %v567
    %v608 = vunpack.c.l.b16 %v568
    %v609 = vpack.c.b16 %v594, %v593
    %v610 = vpack.c.b16 %v596, %v595
    %v611 = vpack.c.b16 %v598, %v597
    %v612 = vpack.c.b16 %v600, %v599
    %v613 = vpack.c.b16 %v602, %v601
    %v614 = vpack.c.b16 %v604, %v603
    %v615 = vpack.c.b16 %v606, %v605
    %v616 = vpack.c.b16 %v608, %v607
    %625 = vmatprep.subr.bf16.mxu0 0
    %626 = vmatpush1.bf16.msra.mxu0 %v609
    %627 = vmatprep.subr.bf16.mxu0 0
    %628 = vmatpush1.bf16.msra.mxu0 %v610
    %629 = vmatprep.subr.bf16.mxu0 0
    %630 = vmatpush1.bf16.msra.mxu0 %v611
    %631 = vmatprep.subr.bf16.mxu0 0
    %632 = vmatpush1.bf16.msra.mxu0 %v612
    %633 = vmatprep.subr.bf16.mxu0 0
    %634 = vmatpush1.bf16.msra.mxu0 %v613
    %635 = vmatprep.subr.bf16.mxu0 0
    %636 = vmatpush1.bf16.msra.mxu0 %v614
    %637 = vmatprep.subr.bf16.mxu0 0
    %638 = vmatpush1.bf16.msra.mxu0 %v615
    %639 = vmatprep.subr.bf16.mxu0 0
    %640 = vmatpush1.bf16.msra.mxu0 %v616
    %641 = vmatprep.subr.bf16.mxu0 0
    %642 = vmatpush1.bf16.msra.mxu0 0
    %643 = vmatprep.subr.bf16.mxu0 0
    %644 = vmatpush1.bf16.msra.mxu0 0
    %645 = vmatprep.subr.bf16.mxu0 0
    %646 = vmatpush1.bf16.msra.mxu0 0
    %647 = vmatprep.subr.bf16.mxu0 0
    %648 = vmatpush1.bf16.msra.mxu0 0
    %649 = vmatprep.subr.bf16.mxu0 0
    %650 = vmatpush1.bf16.msra.mxu0 0
    %651 = vmatprep.subr.bf16.mxu0 0
    %652 = vmatpush1.bf16.msra.mxu0 0
    %653 = vmatprep.subr.bf16.mxu0 0
    %654 = vmatpush1.bf16.msra.mxu0 0
    %655 = vmatprep.subr.bf16.mxu0 0
    %656 = vmatpush1.bf16.msra.mxu0 0
    %657 = vmatprep.mubr.bf16.mxu0 0
    %658 = vmatmul.mubr.bf16.gmra.mrb[0].mxu0 %v551
    %v659 = vpop.f32.mrb[0].mxu0
    %v660 = vadd.f32 %v575, %v659
    %v661 = vpop.f32.mrb[0].mxu0
    %v662 = vpop.f32.mrb[0].mxu0
    %v663 = vpop.f32.mrb[0].mxu0
    %664 = vdwg.mxu0
    %v665 = vadd.f32 %v660, %v433
    %vm666 = vcmp.gt.f32.partialorder %v665, 0.0
    %v667 = vmul.f32 %v665, 0.2
    %v668 = vsel %vm666, %v665, %v667
    %v669 = vpack.c.bf16 %v668, %v668
    %v670 = vld [vmem:[#allocation8] sm:$0xf]
    %v671 = vld [vmem:[#allocation8 + $0x4] sm:$0xf]
    %v672 = vld [vmem:[#allocation8 + $0x8] sm:$0xf]
    %v673 = vld [vmem:[#allocation8 + $0xc] sm:$0xf]
    %v674 = vld [vmem:[#allocation8 + $0x10] sm:$0xf]
    %v675 = vld [vmem:[#allocation8 + $0x14] sm:$0xf]
    %v676 = vld [vmem:[#allocation8 + $0x18] sm:$0xf]
    %v677 = vld [vmem:[#allocation8 + $0x1c] sm:$0xf]
    %v678 = vld [vmem:[#allocation8 + $0x20] sm:$0xf]
    %v679 = vld [vmem:[#allocation8 + $0x24] sm:$0xf]
    %v680 = vld [vmem:[#allocation8 + $0x28] sm:$0xf]
    %v681 = vld [vmem:[#allocation8 + $0x2c] sm:$0xf]
    %v682 = vld [vmem:[#allocation8 + $0x30] sm:$0xf]
    %v683 = vld [vmem:[#allocation8 + $0x34] sm:$0xf]
    %v684 = vld [vmem:[#allocation8 + $0x38] sm:$0xf]
    %v685 = vld [vmem:[#allocation8 + $0x3c] sm:$0xf]
    %v686 = vld [vmem:[%s8] sm:$0x1]
    %v688 = vlaneseq
    %v689 = vshrl.u32 %v688, 7
    %v690 = vsub.s32 0, %v689
    %v691 = vrot.slane %v686, %v690
    %v709 = vunpack.c.l.b16 %v670
    %v710 = vunpack.c.l.b16 %v671
    %v711 = vunpack.c.l.b16 %v672
    %v712 = vunpack.c.l.b16 %v673
    %v713 = vunpack.c.l.b16 %v674
    %v714 = vunpack.c.l.b16 %v675
    %v715 = vunpack.c.l.b16 %v676
    %v716 = vunpack.c.l.b16 %v677
    %v717 = vunpack.c.l.b16 %v678
    %v718 = vunpack.c.l.b16 %v679
    %v719 = vunpack.c.l.b16 %v680
    %v720 = vunpack.c.l.b16 %v681
    %v721 = vunpack.c.l.b16 %v682
    %v722 = vunpack.c.l.b16 %v683
    %v723 = vunpack.c.l.b16 %v684
    %v724 = vunpack.c.l.b16 %v685
    %v725 = vpack.c.b16 %v710, %v709
    %v726 = vpack.c.b16 %v712, %v711
    %v727 = vpack.c.b16 %v714, %v713
    %v728 = vpack.c.b16 %v716, %v715
    %v729 = vpack.c.b16 %v718, %v717
    %v730 = vpack.c.b16 %v720, %v719
    %v731 = vpack.c.b16 %v722, %v721
    %v732 = vpack.c.b16 %v724, %v723
    %741 = vmatprep.subr.bf16.mxu0 0
    %742 = vmatpush1.bf16.msra.mxu0 %v725
    %743 = vmatprep.subr.bf16.mxu0 0
    %744 = vmatpush1.bf16.msra.mxu0 %v726
    %745 = vmatprep.subr.bf16.mxu0 0
    %746 = vmatpush1.bf16.msra.mxu0 %v727
    %747 = vmatprep.subr.bf16.mxu0 0
    %748 = vmatpush1.bf16.msra.mxu0 %v728
    %749 = vmatprep.subr.bf16.mxu0 0
    %750 = vmatpush1.bf16.msra.mxu0 %v729
    %751 = vmatprep.subr.bf16.mxu0 0
    %752 = vmatpush1.bf16.msra.mxu0 %v730
    %753 = vmatprep.subr.bf16.mxu0 0
    %754 = vmatpush1.bf16.msra.mxu0 %v731
    %755 = vmatprep.subr.bf16.mxu0 0
    %756 = vmatpush1.bf16.msra.mxu0 %v732
    %757 = vmatprep.subr.bf16.mxu0 0
    %758 = vmatpush1.bf16.msra.mxu0 0
    %759 = vmatprep.subr.bf16.mxu0 0
    %760 = vmatpush1.bf16.msra.mxu0 0
    %761 = vmatprep.subr.bf16.mxu0 0
    %762 = vmatpush1.bf16.msra.mxu0 0
    %763 = vmatprep.subr.bf16.mxu0 0
    %764 = vmatpush1.bf16.msra.mxu0 0
    %765 = vmatprep.subr.bf16.mxu0 0
    %766 = vmatpush1.bf16.msra.mxu0 0
    %767 = vmatprep.subr.bf16.mxu0 0
    %768 = vmatpush1.bf16.msra.mxu0 0
    %769 = vmatprep.subr.bf16.mxu0 0
    %770 = vmatpush1.bf16.msra.mxu0 0
    %771 = vmatprep.subr.bf16.mxu0 0
    %772 = vmatpush1.bf16.msra.mxu0 0
    %773 = vmatprep.mubr.bf16.mxu0 0
    %774 = vmatmul.mubr.bf16.gmra.mrb[0].mxu0 %v669
    %v775 = vpop.f32.mrb[0].mxu0
    %v776 = vadd.f32 %v691, %v775
    %v777 = vpop.f32.mrb[0].mxu0
    %v778 = vpop.f32.mrb[0].mxu0
    %v779 = vpop.f32.mrb[0].mxu0
    %780 = vdwg.mxu0
    %781 = vst [vmem:[#allocation10] sm:$0xff] %v776
    // Predicated region
    $region54: #{run.1} parent=1 // pred_check
      _
    $region55: #{run.1} parent=1 // pred_check_branch
      %783 = sbr.rel (0) target = $region57
    $region56: #{run.1} parent=1 // pred_region
      %s785 = ssub.s32 128, 128
      %786 = vsyncadd [#allocation4], %s785
      %s788 = sshll.u32 [#allocation10], 4
      %s789 = int_to_ptr.vmem [resolvable:$true] %s788
      %791 = dma.vmem_to_hbm [thread:$0]  %s789, 128, %s9, [#allocation4]
    $region57: #{run.1} parent=1 // pred_fallthru
      _
    // Predicated region
    $region58: #{run.1} parent=1 // pred_check
      _
    $region59: #{run.1} parent=1 // pred_check_branch
      %793 = sbr.rel (0) target = $region61
    $region60: #{run.1} parent=1 // pred_region
      %794 = dma.done [#allocation4], 128
    $region61: #{run.1} parent=1 // pred_fallthru
      _
    %795 = vsyncpa [#allocation3], 1
    %796 = vsyncpa [#allocation6], 1
    %797 = vsyncpa [#allocation9], 1
    %798 = vsyncpa [#allocation4], 1

</llo_original>
